<compile_context>
chip_gen: v7x
topology: tpu7x:2x2x1
jax: 0.10.0
libtpu: 0.0.40
codegen_flags: <defaults>
</compile_context>

<pallas_src>
import functools

import jax
import jax.numpy as jnp
from jax import lax
from jax.experimental import pallas as pl
from jax.experimental.pallas import tpu as pltpu

EPS = 1e-8
PRELU_ALPHA = 0.25  # torch.nn.PReLU default init
LANE = 128


def _rup(n, m):
    return ((n + m - 1) // m) * m


# ----------------------------- front: encoder + gLN + bottleneck -------------

def _front_kernel(fr_ref, ew_ref, g_ref, be_ref, bw_ref, bb_ref,
                  enc_ref, y_ref, *, n_enc):
    """Per sample: enc = frames @ enc_w ; gLN(enc) ; y = gLN(enc) @ bn_w + bn_b."""
    fr = fr_ref[0]                                                    # (L, win) f32
    enc = jnp.dot(fr.astype(jnp.bfloat16), ew_ref[...],
                  preferred_element_type=jnp.float32)                 # (L, Ep) f32
    enc_ref[0] = enc
    # single-pass gLN over the n_enc REAL elements (padded cols are exactly 0)
    mu = jnp.sum(enc) / n_enc
    var = jnp.maximum(jnp.sum(enc * enc) / n_enc - mu * mu, 0.0)
    yn = (enc - mu) * lax.rsqrt(var + EPS) * g_ref[...] + be_ref[...]
    y_ref[0] = jnp.dot(yn.astype(jnp.bfloat16), bw_ref[...],
                       preferred_element_type=jnp.float32) + bb_ref[...]


def pallas_front(frames, enc_w, ln_g, ln_b, bn_w, bn_b, *, e_real):
    B, L, win = frames.shape
    Ep = enc_w.shape[1]
    BNp = bn_w.shape[1]
    kern = functools.partial(_front_kernel, n_enc=float(L * e_real))
    return pl.pallas_call(
        kern,
        out_shape=(jax.ShapeDtypeStruct((B, L, Ep), jnp.float32),
                   jax.ShapeDtypeStruct((B, L, BNp), jnp.float32)),
        grid=(B,),
        in_specs=[pl.BlockSpec((1, L, win), lambda b: (b, 0, 0)),
                  pl.BlockSpec((win, Ep), lambda b: (0, 0)),
                  pl.BlockSpec((1, Ep), lambda b: (0, 0)),
                  pl.BlockSpec((1, Ep), lambda b: (0, 0)),
                  pl.BlockSpec((Ep, BNp), lambda b: (0, 0)),
                  pl.BlockSpec((1, BNp), lambda b: (0, 0))],
        out_specs=(pl.BlockSpec((1, L, Ep), lambda b: (b, 0, 0)),
                   pl.BlockSpec((1, L, BNp), lambda b: (b, 0, 0))),
        compiler_params=pltpu.CompilerParams(dimension_semantics=("parallel",)),
    )(frames, enc_w, ln_g, ln_b, bn_w, bn_b)


# ----------------------- fused TCN stack (all blocks, one call) ---------------

def _tcn_stack_kernel(dil_ref,                       # scalar-prefetch (SMEM)
                      y_ref,                         # bottleneck output (input)
                      w1_ref, b1_ref, g1_ref, be1_ref,
                      wd_ref, bd_ref, g2_ref, be2_ref,
                      wrs_ref, brs_ref,
                      skip_ref,                      # output accumulator
                      yacc_ref, pad_ref,             # VMEM scratch
                      *, n_h, bn_p, pad_off, alpha):
    """One grid step = one dilated depthwise-separable block for one sample."""
    l = pl.program_id(1)
    L = yacc_ref.shape[0]

    @pl.when(l == 0)
    def _init():
        yacc_ref[...] = y_ref[0]                       # residual stream -> VMEM
        skip_ref[...] = jnp.zeros_like(skip_ref)       # skip accumulator
        pad_ref[...] = jnp.zeros_like(pad_ref)         # conv halo zeroed ONCE

    x = yacc_ref[...]                                  # (L, BNp) f32
    d = dil_ref[l]                                     # dilation of this block

    # 1x1 expand (MXU: bf16 operands, f32 accumulate)
    h = jnp.dot(x.astype(jnp.bfloat16), w1_ref[0],
                preferred_element_type=jnp.float32) + b1_ref[0]       # (L, Hp)

    # PReLU + single-pass gLN
    h = jnp.where(h >= 0, h, alpha * h)
    mu = jnp.sum(h) / n_h
    var = jnp.maximum(jnp.sum(h * h) / n_h - mu * mu, 0.0)
    h = (h - mu) * lax.rsqrt(var + EPS) * g1_ref[0] + be1_ref[0]

    # depthwise conv1d, kernel=3, dilation=d, 'same'; zero halo lives in scratch
    pad_ref[pl.ds(pad_off, L), :] = h                  # aligned store (pad_off % 8 == 0)
    w = wd_ref[0]                                      # (3, Hp) f32
    left = pad_ref[pl.ds(pad_off - d, L), :]
    right = pad_ref[pl.ds(pad_off + d, L), :]
    h = left * w[0:1] + h * w[1:2] + right * w[2:3] + bd_ref[0]

    # PReLU + single-pass gLN
    h = jnp.where(h >= 0, h, alpha * h)
    mu = jnp.sum(h) / n_h
    var = jnp.maximum(jnp.sum(h * h) / n_h - mu * mu, 0.0)
    h = (h - mu) * lax.rsqrt(var + EPS) * g2_ref[0] + be2_ref[0]

    # fused residual|skip 1x1 conv: one (Hp, 2*BNp) matmul, 128-lane aligned split
    rs = jnp.dot(h.astype(jnp.bfloat16), wrs_ref[0],
                 preferred_element_type=jnp.float32) + brs_ref[0]     # (L, 2*BNp)
    yacc_ref[...] = x + rs[:, :bn_p]                   # residual (VMEM resident)
    skip_ref[0] = skip_ref[0] + rs[:, bn_p:]           # skip accumulation


def pallas_tcn_stack(y, blk, dilations, *, h_real, d_max):
    B, L, BNp = y.shape
    nb, _, Hp = blk["w1"].shape
    pad_off = _rup(max(d_max, 1), 8)                   # 8-aligned store offset
    kern = functools.partial(_tcn_stack_kernel, n_h=float(L * h_real),
                             bn_p=BNp, pad_off=pad_off, alpha=PRELU_ALPHA)
    grid_spec = pltpu.PrefetchScalarGridSpec(
        num_scalar_prefetch=1,
        grid=(B, nb),
        in_specs=[
            pl.BlockSpec((1, L, BNp), lambda b, l, dil: (b, 0, 0)),       # y (fetched once/b)
            pl.BlockSpec((1, BNp, Hp), lambda b, l, dil: (l, 0, 0)),      # w1
            pl.BlockSpec((1, 1, Hp), lambda b, l, dil: (l, 0, 0)),        # b1
            pl.BlockSpec((1, 1, Hp), lambda b, l, dil: (l, 0, 0)),        # g1
            pl.BlockSpec((1, 1, Hp), lambda b, l, dil: (l, 0, 0)),        # be1
            pl.BlockSpec((1, 3, Hp), lambda b, l, dil: (l, 0, 0)),        # wd
            pl.BlockSpec((1, 1, Hp), lambda b, l, dil: (l, 0, 0)),        # bd
            pl.BlockSpec((1, 1, Hp), lambda b, l, dil: (l, 0, 0)),        # g2
            pl.BlockSpec((1, 1, Hp), lambda b, l, dil: (l, 0, 0)),        # be2
            pl.BlockSpec((1, Hp, 2 * BNp), lambda b, l, dil: (l, 0, 0)),  # wrs
            pl.BlockSpec((1, 1, 2 * BNp), lambda b, l, dil: (l, 0, 0)),   # brs
        ],
        out_specs=pl.BlockSpec((1, L, BNp), lambda b, l, dil: (b, 0, 0)),  # skip acc
        scratch_shapes=[pltpu.VMEM((L, BNp), jnp.float32),                 # residual y
                        pltpu.VMEM((pad_off + L + d_max, Hp), jnp.float32)],
    )
    return pl.pallas_call(
        kern,
        grid_spec=grid_spec,
        out_shape=jax.ShapeDtypeStruct((B, L, BNp), jnp.float32),
        compiler_params=pltpu.CompilerParams(
            dimension_semantics=("parallel", "arbitrary")),
    )(dilations, y,
      blk["w1"], blk["b1"], blk["g1"], blk["be1"],
      blk["wd"], blk["bd"], blk["g2"], blk["be2"],
      blk["wrs"], blk["brs"])


# ------------------ tail: PReLU + mask conv + sigmoid*enc + decoder -----------

def _tail_kernel(sk_ref, enc_ref, ow_ref, ob_ref, dw_ref, dec_ref, *, alpha):
    s = sk_ref[0]                                                     # (L, BNp)
    s = jnp.where(s >= 0, s, alpha * s)
    m = jnp.dot(s.astype(jnp.bfloat16), ow_ref[...],
                preferred_element_type=jnp.float32) + ob_ref[...]     # (L, Ep)
    masked = jax.nn.sigmoid(m) * enc_ref[0]                           # padded cols stay 0
    dec_ref[0] = jnp.dot(masked.astype(jnp.bfloat16), dw_ref[...],
                         preferred_element_type=jnp.float32)          # (L, WINp)


def pallas_tail(skip, enc, out_w, out_b, dec_w):
    B, L, BNp = skip.shape
    Ep = out_w.shape[1]
    WINp = dec_w.shape[1]
    kern = functools.partial(_tail_kernel, alpha=PRELU_ALPHA)
    return pl.pallas_call(
        kern,
        out_shape=jax.ShapeDtypeStruct((B, L, WINp), jnp.float32),
        grid=(B,),
        in_specs=[pl.BlockSpec((1, L, BNp), lambda b: (b, 0, 0)),
                  pl.BlockSpec((1, L, Ep), lambda b: (b, 0, 0)),
                  pl.BlockSpec((BNp, Ep), lambda b: (0, 0)),
                  pl.BlockSpec((1, Ep), lambda b: (0, 0)),
                  pl.BlockSpec((Ep, WINp), lambda b: (0, 0))],
        out_specs=pl.BlockSpec((1, L, WINp), lambda b: (b, 0, 0)),
        compiler_params=pltpu.CompilerParams(dimension_semantics=("parallel",)),
    )(skip, enc, out_w, out_b, dec_w)


# ----------------------------- parameter init --------------------------------

def init_params(key, encoder_dim, feature_dim, win, layer, stack):
    """Weights are generated at the real dims, zero-padded to 128-lane multiples,
    per-block weights stacked on a leading (n_blocks,) axis; MXU weights bf16."""
    hidden = feature_dim * 4
    Ep, BNp, Hp, WINp = (_rup(d, LANE) for d in (encoder_dim, feature_dim, hidden, win))
    n_blocks = layer * stack
    keys = iter(jax.random.split(key, 1024))

    def nrm(shape, scale=0.1):
        return scale * jax.random.normal(next(keys), shape, jnp.float32)

    def padto(x, shape):
        return jnp.pad(x, [(0, t - s) for s, t in zip(x.shape, shape)])

    p = {}
    # encoder Conv1d(1, E, win, stride, bias=False): weight (E,1,win) -> (win, E)
    p["enc_w"] = padto(nrm((win, encoder_dim)), (win, Ep)).astype(jnp.bfloat16)
    # decoder ConvTranspose1d(E, 1, win, stride, bias=False): (E,1,win) -> (E, win)
    p["dec_w"] = padto(nrm((encoder_dim, win)), (Ep, WINp)).astype(jnp.bfloat16)
    # TCN input gLN + bottleneck 1x1 (padded gamma/beta are 0 -> padded chans stay 0)
    p["ln_g"] = padto(jnp.ones((1, encoder_dim), jnp.float32), (1, Ep))
    p["ln_b"] = jnp.zeros((1, Ep), jnp.float32)
    p["bn_w"] = padto(nrm((encoder_dim, feature_dim)), (Ep, BNp)).astype(jnp.bfloat16)
    p["bn_b"] = padto(nrm((1, feature_dim), 0.01), (1, BNp))

    w1, b1, g1, be1, wd, bd, g2, be2, wrs, brs = ([] for _ in range(10))
    for _ in range(n_blocks):
        w1.append(padto(nrm((feature_dim, hidden)), (BNp, Hp)))
        b1.append(padto(nrm((1, hidden), 0.01), (1, Hp)))
        g1.append(padto(jnp.ones((1, hidden), jnp.float32), (1, Hp)))
        be1.append(jnp.zeros((1, Hp), jnp.float32))
        wd.append(padto(nrm((3, hidden)), (3, Hp)))
        bd.append(padto(nrm((1, hidden), 0.01), (1, Hp)))
        g2.append(padto(jnp.ones((1, hidden), jnp.float32), (1, Hp)))
        be2.append(jnp.zeros((1, Hp), jnp.float32))
        # res 1x1 at cols [0:BN], skip 1x1 at cols [BNp:BNp+BN] (128-aligned split)
        wr = jnp.zeros((Hp, 2 * BNp), jnp.float32)
        wr = wr.at[:hidden, :feature_dim].set(nrm((hidden, feature_dim)))
        wr = wr.at[:hidden, BNp:BNp + feature_dim].set(nrm((hidden, feature_dim)))
        wrs.append(wr)
        br = jnp.zeros((1, 2 * BNp), jnp.float32)
        br = br.at[:, :feature_dim].set(nrm((1, feature_dim), 0.01))
        br = br.at[:, BNp:BNp + feature_dim].set(nrm((1, feature_dim), 0.01))
        brs.append(br)

    p["blocks"] = dict(
        w1=jnp.stack(w1).astype(jnp.bfloat16),
        b1=jnp.stack(b1), g1=jnp.stack(g1), be1=jnp.stack(be1),
        wd=jnp.stack(wd), bd=jnp.stack(bd), g2=jnp.stack(g2), be2=jnp.stack(be2),
        wrs=jnp.stack(wrs).astype(jnp.bfloat16), brs=jnp.stack(brs),
    )
    # TCN output: PReLU + 1x1 conv (BN_dim -> encoder_dim)
    p["out_w"] = padto(nrm((feature_dim, encoder_dim)), (BNp, Ep)).astype(jnp.bfloat16)
    p["out_b"] = padto(nrm((1, encoder_dim), 0.01), (1, Ep))
    p["dilations"] = jnp.array([2 ** (i % layer) for i in range(n_blocks)], jnp.int32)
    return p


# ------------------------------ forward pass ----------------------------------

def tasnet_forward(params, x, *, win, stride, encoder_dim, feature_dim, layer, stack):
    """x: (B, nsample) or (B, 1, nsample) -> (B, 1, nsample)."""
    if x.ndim == 2:
        x = x[:, None, :]
    x = x.astype(jnp.float32)
    B, _, nsample = x.shape
    assert win == 2 * stride

    # --- patting_signal (exact PyTorch semantics) ---
    rest = win - (stride + nsample % win) % win
    if rest > 0:
        x = jnp.pad(x, ((0, 0), (0, 0), (0, rest)))
    x = jnp.pad(x, ((0, 0), (0, 0), (stride, stride)))
    Tpad = x.shape[-1]
    L = (Tpad - win) // stride + 1

    # --- encoder framing via two reshapes (win == 2*stride) ---
    xw = x[:, 0, :]
    fa = xw[:, :L * stride].reshape(B, L, stride)
    fb = xw[:, stride:(L + 1) * stride].reshape(B, L, stride)
    frames = jnp.concatenate([fa, fb], axis=2)                        # (B, L, win)

    # --- fused encoder + gLN + bottleneck ---
    enc3, y = pallas_front(frames, params["enc_w"], params["ln_g"], params["ln_b"],
                           params["bn_w"], params["bn_b"], e_real=encoder_dim)

    # --- whole TCN stack in ONE call (y / skip VMEM-resident across blocks) ---
    skip = pallas_tcn_stack(y, params["blocks"], params["dilations"],
                            h_real=feature_dim * 4, d_max=2 ** (layer - 1))

    # --- fused output 1x1 + sigmoid mask + decoder matmul (num_speeker = 1) ---
    dec_frames = pallas_tail(skip, enc3, params["out_w"], params["out_b"],
                             params["dec_w"])                         # (B, L, WINp)

    # --- overlap-add + trim (glue) ---
    out_len = (L - 1) * stride + win
    out = jnp.zeros((B, out_len), jnp.float32)
    out = out.at[:, :L * stride].add(dec_frames[:, :, :stride].reshape(B, L * stride))
    out = out.at[:, stride:].add(dec_frames[:, :, stride:win].reshape(B, L * stride))
    out = out[:, stride: out_len - (rest + stride)]                   # [stride : -(rest+stride)]
    return out.reshape(B, 1, -1)


# ----------------------------------- main -------------------------------------

if __name__ == "__main__":
    # Small, shape-consistent config (scaled-down TasNet hyperparameters).
    encoder_dim, feature_dim = 32, 16
    sampling_rate, win_ms = 16000, 2
    win = sampling_rate * win_ms // 1000        # 32 samples
    stride = win // 2                            # 16
    layer, stack = 2, 2
    B, nsample = 2, 200

    key = jax.random.PRNGKey(0)
    kp, kx = jax.random.split(key)
    params = init_params(kp, encoder_dim, feature_dim, win, layer, stack)
    x = jax.random.normal(kx, (B, 1, nsample), jnp.float32)

    fwd = jax.jit(functools.partial(
        tasnet_forward, win=win, stride=stride, encoder_dim=encoder_dim,
        feature_dim=feature_dim, layer=layer, stack=stack))
    out = fwd(params, x)
    jax.block_until_ready(out)
    assert out.shape == (B, 1, nsample), out.shape
    assert bool(jnp.all(jnp.isfinite(out)))
    print("KERNEL_OK")
</pallas_src>

<mosaic_0001>
module attributes {stable_mosaic.version = 11 : i64} {
  func.func @_front_kernel(%arg0: i32, %arg1: memref<1x14x32xf32, #tpu.memory_space<vmem>>, %arg2: memref<32x128xbf16, #tpu.memory_space<vmem>>, %arg3: memref<1x128xf32, #tpu.memory_space<vmem>>, %arg4: memref<1x128xf32, #tpu.memory_space<vmem>>, %arg5: memref<128x128xbf16, #tpu.memory_space<vmem>>, %arg6: memref<1x128xf32, #tpu.memory_space<vmem>>, %arg7: memref<1x14x128xf32, #tpu.memory_space<vmem>>, %arg8: memref<1x14x128xf32, #tpu.memory_space<vmem>>) attributes {dimension_semantics = [#tpu.dimension_semantics<parallel>], iteration_bounds = array<i64: 2>, scalar_prefetch = 0 : i64, scratch_operands = 0 : i64, tpu.core_type = #tpu.core_type<tc>, window_params = [{transform_indices = @transform_0, window_bounds = array<i64: 1, 14, 32>}, {pipeline_mode = #tpu.pipeline_mode<synchronous>, transform_indices = @transform_1, window_bounds = array<i64: 32, 128>}, {pipeline_mode = #tpu.pipeline_mode<synchronous>, transform_indices = @transform_2, window_bounds = array<i64: 1, 128>}, {pipeline_mode = #tpu.pipeline_mode<synchronous>, transform_indices = @transform_3, window_bounds = array<i64: 1, 128>}, {pipeline_mode = #tpu.pipeline_mode<synchronous>, transform_indices = @transform_4, window_bounds = array<i64: 128, 128>}, {pipeline_mode = #tpu.pipeline_mode<synchronous>, transform_indices = @transform_5, window_bounds = array<i64: 1, 128>}, {transform_indices = @transform_6, window_bounds = array<i64: 1, 14, 128>}, {transform_indices = @transform_7, window_bounds = array<i64: 1, 14, 128>}]} {
    %c0 = arith.constant 0 : index
    %c0_0 = arith.constant 0 : index
    %c0_1 = arith.constant 0 : index
    %0 = vector.load %arg1[%c0, %c0_0, %c0_1] : memref<1x14x32xf32, #tpu.memory_space<vmem>>, vector<1x14x32xf32>
    %1 = vector.shape_cast %0 : vector<1x14x32xf32> to vector<14x32xf32>
    %2 = arith.truncf %1 : vector<14x32xf32> to vector<14x32xbf16>
    %c0_2 = arith.constant 0 : index
    %c0_3 = arith.constant 0 : index
    %3 = vector.load %arg2[%c0_2, %c0_3] : memref<32x128xbf16, #tpu.memory_space<vmem>>, vector<32x128xbf16>
    %cst = arith.constant dense<0.000000e+00> : vector<14x128xf32>
    %4 = tpu.matmul %2, %3, %cst {dimension_numbers = #tpu.dot_dimension_numbers<[1], [0], [0], [1], [0, 0, 1, 1], [], []>} : vector<14x32xbf16>, vector<32x128xbf16>, vector<14x128xf32> -> vector<14x128xf32>
    %c0_4 = arith.constant 0 : index
    %c0_5 = arith.constant 0 : index
    %c0_6 = arith.constant 0 : index
    %5 = vector.load %arg7[%c0_4, %c0_5, %c0_6] : memref<1x14x128xf32, #tpu.memory_space<vmem>>, vector<1x14x128xf32>
    %6 = vector.shape_cast %5 : vector<1x14x128xf32> to vector<14x128xf32>
    %7 = vector.shape_cast %4 : vector<14x128xf32> to vector<1x14x128xf32>
    tpu.vector_store %arg7[%c0_4, %c0_5, %c0_6], %7 {strides = array<i32>} : memref<1x14x128xf32, #tpu.memory_space<vmem>>, vector<1x14x128xf32>,
    %8 = vector.shape_cast %4 : vector<14x128xf32> to vector<1x14x128xf32>
    %cst_7 = arith.constant dense<0.000000e+00> : vector<1xf32>
    %9 = vector.multi_reduction <add>, %8, %cst_7 [1, 2] : vector<1x14x128xf32> to vector<1xf32>
    %10 = vector.shape_cast %9 : vector<1xf32> to vector<1x1x1xf32>
    %11 = vector.extract %10[0, 0, 0] : f32 from vector<1x1x1xf32>
    %cst_8 = arith.constant 4.480000e+02 : f32
    %12 = arith.divf %11, %cst_8 : f32
    %13 = arith.mulf %4, %4 : vector<14x128xf32>
    %14 = vector.shape_cast %13 : vector<14x128xf32> to vector<1x14x128xf32>
    %cst_9 = arith.constant dense<0.000000e+00> : vector<1xf32>
    %15 = vector.multi_reduction <add>, %14, %cst_9 [1, 2] : vector<1x14x128xf32> to vector<1xf32>
    %16 = vector.shape_cast %15 : vector<1xf32> to vector<1x1x1xf32>
    %17 = vector.extract %16[0, 0, 0] : f32 from vector<1x1x1xf32>
    %cst_10 = arith.constant 4.480000e+02 : f32
    %18 = arith.divf %17, %cst_10 : f32
    %19 = arith.mulf %12, %12 : f32
    %20 = arith.subf %18, %19 : f32
    %cst_11 = arith.constant 0.000000e+00 : f32
    %21 = arith.maximumf %20, %cst_11 : f32
    %22 = vector.broadcast %12 : f32 to vector<14x128xf32>
    %23 = arith.subf %4, %22 : vector<14x128xf32>
    %cst_12 = arith.constant 9.99999993E-9 : f32
    %24 = arith.addf %21, %cst_12 : f32
    %25 = math.rsqrt %24 : f32
    %26 = vector.broadcast %25 : f32 to vector<14x128xf32>
    %27 = arith.mulf %23, %26 : vector<14x128xf32>
    %c0_13 = arith.constant 0 : index
    %c0_14 = arith.constant 0 : index
    %28 = vector.load %arg3[%c0_13, %c0_14] : memref<1x128xf32, #tpu.memory_space<vmem>>, vector<1x128xf32>
    %29 = vector.broadcast %28 : vector<1x128xf32> to vector<14x128xf32>
    %30 = arith.mulf %27, %29 : vector<14x128xf32>
    %c0_15 = arith.constant 0 : index
    %c0_16 = arith.constant 0 : index
    %31 = vector.load %arg4[%c0_15, %c0_16] : memref<1x128xf32, #tpu.memory_space<vmem>>, vector<1x128xf32>
    %32 = vector.broadcast %31 : vector<1x128xf32> to vector<14x128xf32>
    %33 = arith.addf %30, %32 : vector<14x128xf32>
    %34 = arith.truncf %33 : vector<14x128xf32> to vector<14x128xbf16>
    %c0_17 = arith.constant 0 : index
    %c0_18 = arith.constant 0 : index
    %35 = vector.load %arg5[%c0_17, %c0_18] : memref<128x128xbf16, #tpu.memory_space<vmem>>, vector<128x128xbf16>
    %cst_19 = arith.constant dense<0.000000e+00> : vector<14x128xf32>
    %36 = tpu.matmul %34, %35, %cst_19 {dimension_numbers = #tpu.dot_dimension_numbers<[1], [0], [0], [1], [0, 0, 1, 1], [], []>} : vector<14x128xbf16>, vector<128x128xbf16>, vector<14x128xf32> -> vector<14x128xf32>
    %c0_20 = arith.constant 0 : index
    %c0_21 = arith.constant 0 : index
    %37 = vector.load %arg6[%c0_20, %c0_21] : memref<1x128xf32, #tpu.memory_space<vmem>>, vector<1x128xf32>
    %38 = vector.broadcast %37 : vector<1x128xf32> to vector<14x128xf32>
    %39 = arith.addf %36, %38 : vector<14x128xf32>
    %c0_22 = arith.constant 0 : index
    %c0_23 = arith.constant 0 : index
    %c0_24 = arith.constant 0 : index
    %40 = vector.load %arg8[%c0_22, %c0_23, %c0_24] : memref<1x14x128xf32, #tpu.memory_space<vmem>>, vector<1x14x128xf32>
    %41 = vector.shape_cast %40 : vector<1x14x128xf32> to vector<14x128xf32>
    %42 = vector.shape_cast %39 : vector<14x128xf32> to vector<1x14x128xf32>
    tpu.vector_store %arg8[%c0_22, %c0_23, %c0_24], %42 {strides = array<i32>} : memref<1x14x128xf32, #tpu.memory_space<vmem>>, vector<1x14x128xf32>,
    return
  }
  func.func @transform_0(%arg0: i32) -> (i32, i32, i32) {
    %c0_i32 = arith.constant 0 : i32
    %c0_i32_0 = arith.constant 0 : i32
    %c0_i32_1 = arith.constant 0 : i32
    return %arg0, %c0_i32, %c0_i32_0 : i32, i32, i32
  }
  func.func @transform_1(%arg0: i32) -> (i32, i32) {
    %c0_i32 = arith.constant 0 : i32
    %c0_i32_0 = arith.constant 0 : i32
    %c0_i32_1 = arith.constant 0 : i32
    return %c0_i32, %c0_i32_0 : i32, i32
  }
  func.func @transform_2(%arg0: i32) -> (i32, i32) {
    %c0_i32 = arith.constant 0 : i32
    %c0_i32_0 = arith.constant 0 : i32
    %c0_i32_1 = arith.constant 0 : i32
    return %c0_i32, %c0_i32_0 : i32, i32
  }
  func.func @transform_3(%arg0: i32) -> (i32, i32) {
    %c0_i32 = arith.constant 0 : i32
    %c0_i32_0 = arith.constant 0 : i32
    %c0_i32_1 = arith.constant 0 : i32
    return %c0_i32, %c0_i32_0 : i32, i32
  }
  func.func @transform_4(%arg0: i32) -> (i32, i32) {
    %c0_i32 = arith.constant 0 : i32
    %c0_i32_0 = arith.constant 0 : i32
    %c0_i32_1 = arith.constant 0 : i32
    return %c0_i32, %c0_i32_0 : i32, i32
  }
  func.func @transform_5(%arg0: i32) -> (i32, i32) {
    %c0_i32 = arith.constant 0 : i32
    %c0_i32_0 = arith.constant 0 : i32
    %c0_i32_1 = arith.constant 0 : i32
    return %c0_i32, %c0_i32_0 : i32, i32
  }
  func.func @transform_6(%arg0: i32) -> (i32, i32, i32) {
    %c0_i32 = arith.constant 0 : i32
    %c0_i32_0 = arith.constant 0 : i32
    %c0_i32_1 = arith.constant 0 : i32
    return %arg0, %c0_i32, %c0_i32_0 : i32, i32, i32
  }
  func.func @transform_7(%arg0: i32) -> (i32, i32, i32) {
    %c0_i32 = arith.constant 0 : i32
    %c0_i32_0 = arith.constant 0 : i32
    %c0_i32_1 = arith.constant 0 : i32
    return %arg0, %c0_i32, %c0_i32_0 : i32, i32, i32
  }
}

module attributes {stable_mosaic.version = 11 : i64} {
  func.func @_tail_kernel(%arg0: i32, %arg1: memref<1x14x128xf32, #tpu.memory_space<vmem>>, %arg2: memref<1x14x128xf32, #tpu.memory_space<vmem>>, %arg3: memref<128x128xbf16, #tpu.memory_space<vmem>>, %arg4: memref<1x128xf32, #tpu.memory_space<vmem>>, %arg5: memref<128x128xbf16, #tpu.memory_space<vmem>>, %arg6: memref<1x14x128xf32, #tpu.memory_space<vmem>>) attributes {dimension_semantics = [#tpu.dimension_semantics<parallel>], iteration_bounds = array<i64: 2>, scalar_prefetch = 0 : i64, scratch_operands = 0 : i64, tpu.core_type = #tpu.core_type<tc>, window_params = [{transform_indices = @transform_0, window_bounds = array<i64: 1, 14, 128>}, {transform_indices = @transform_1, window_bounds = array<i64: 1, 14, 128>}, {pipeline_mode = #tpu.pipeline_mode<synchronous>, transform_indices = @transform_2, window_bounds = array<i64: 128, 128>}, {pipeline_mode = #tpu.pipeline_mode<synchronous>, transform_indices = @transform_3, window_bounds = array<i64: 1, 128>}, {pipeline_mode = #tpu.pipeline_mode<synchronous>, transform_indices = @transform_4, window_bounds = array<i64: 128, 128>}, {transform_indices = @transform_5, window_bounds = array<i64: 1, 14, 128>}]} {
    %c0 = arith.constant 0 : index
    %c0_0 = arith.constant 0 : index
    %c0_1 = arith.constant 0 : index
    %0 = vector.load %arg1[%c0, %c0_0, %c0_1] : memref<1x14x128xf32, #tpu.memory_space<vmem>>, vector<1x14x128xf32>
    %1 = vector.shape_cast %0 : vector<1x14x128xf32> to vector<14x128xf32>
    %cst = arith.constant 0.000000e+00 : f32
    %2 = vector.broadcast %cst : f32 to vector<14x128xf32>
    %3 = arith.cmpf oge, %1, %2 : vector<14x128xf32>
    %cst_2 = arith.constant 2.500000e-01 : f32
    %4 = vector.broadcast %cst_2 : f32 to vector<14x128xf32>
    %5 = arith.mulf %4, %1 : vector<14x128xf32>
    %6 = arith.select %3, %1, %5 : vector<14x128xi1>, vector<14x128xf32>
    %7 = arith.truncf %6 : vector<14x128xf32> to vector<14x128xbf16>
    %c0_3 = arith.constant 0 : index
    %c0_4 = arith.constant 0 : index
    %8 = vector.load %arg3[%c0_3, %c0_4] : memref<128x128xbf16, #tpu.memory_space<vmem>>, vector<128x128xbf16>
    %cst_5 = arith.constant dense<0.000000e+00> : vector<14x128xf32>
    %9 = tpu.matmul %7, %8, %cst_5 {dimension_numbers = #tpu.dot_dimension_numbers<[1], [0], [0], [1], [0, 0, 1, 1], [], []>} : vector<14x128xbf16>, vector<128x128xbf16>, vector<14x128xf32> -> vector<14x128xf32>
    %c0_6 = arith.constant 0 : index
    %c0_7 = arith.constant 0 : index
    %10 = vector.load %arg4[%c0_6, %c0_7] : memref<1x128xf32, #tpu.memory_space<vmem>>, vector<1x128xf32>
    %11 = vector.broadcast %10 : vector<1x128xf32> to vector<14x128xf32>
    %12 = arith.addf %9, %11 : vector<14x128xf32>
    %13 = arith.negf %12 : vector<14x128xf32>
    %14 = math.exp %13 : vector<14x128xf32>
    %cst_8 = arith.constant 1.000000e+00 : f32
    %15 = vector.broadcast %cst_8 : f32 to vector<14x128xf32>
    %16 = arith.addf %15, %14 : vector<14x128xf32>
    %17 = arith.divf %15, %16 : vector<14x128xf32>
    %c0_9 = arith.constant 0 : index
    %c0_10 = arith.constant 0 : index
    %c0_11 = arith.constant 0 : index
    %18 = vector.load %arg2[%c0_9, %c0_10, %c0_11] : memref<1x14x128xf32, #tpu.memory_space<vmem>>, vector<1x14x128xf32>
    %19 = vector.shape_cast %18 : vector<1x14x128xf32> to vector<14x128xf32>
    %20 = arith.mulf %17, %19 : vector<14x128xf32>
    %21 = arith.truncf %20 : vector<14x128xf32> to vector<14x128xbf16>
    %c0_12 = arith.constant 0 : index
    %c0_13 = arith.constant 0 : index
    %22 = vector.load %arg5[%c0_12, %c0_13] : memref<128x128xbf16, #tpu.memory_space<vmem>>, vector<128x128xbf16>
    %cst_14 = arith.constant dense<0.000000e+00> : vector<14x128xf32>
    %23 = tpu.matmul %21, %22, %cst_14 {dimension_numbers = #tpu.dot_dimension_numbers<[1], [0], [0], [1], [0, 0, 1, 1], [], []>} : vector<14x128xbf16>, vector<128x128xbf16>, vector<14x128xf32> -> vector<14x128xf32>
    %c0_15 = arith.constant 0 : index
    %c0_16 = arith.constant 0 : index
    %c0_17 = arith.constant 0 : index
    %24 = vector.load %arg6[%c0_15, %c0_16, %c0_17] : memref<1x14x128xf32, #tpu.memory_space<vmem>>, vector<1x14x128xf32>
    %25 = vector.shape_cast %24 : vector<1x14x128xf32> to vector<14x128xf32>
    %26 = vector.shape_cast %23 : vector<14x128xf32> to vector<1x14x128xf32>
    tpu.vector_store %arg6[%c0_15, %c0_16, %c0_17], %26 {strides = array<i32>} : memref<1x14x128xf32, #tpu.memory_space<vmem>>, vector<1x14x128xf32>,
    return
  }
  func.func @transform_0(%arg0: i32) -> (i32, i32, i32) {
    %c0_i32 = arith.constant 0 : i32
    %c0_i32_0 = arith.constant 0 : i32
    %c0_i32_1 = arith.constant 0 : i32
    return %arg0, %c0_i32, %c0_i32_0 : i32, i32, i32
  }
  func.func @transform_1(%arg0: i32) -> (i32, i32, i32) {
    %c0_i32 = arith.constant 0 : i32
    %c0_i32_0 = arith.constant 0 : i32
    %c0_i32_1 = arith.constant 0 : i32
    return %arg0, %c0_i32, %c0_i32_0 : i32, i32, i32
  }
  func.func @transform_2(%arg0: i32) -> (i32, i32) {
    %c0_i32 = arith.constant 0 : i32
    %c0_i32_0 = arith.constant 0 : i32
    %c0_i32_1 = arith.constant 0 : i32
    return %c0_i32, %c0_i32_0 : i32, i32
  }
  func.func @transform_3(%arg0: i32) -> (i32, i32) {
    %c0_i32 = arith.constant 0 : i32
    %c0_i32_0 = arith.constant 0 : i32
    %c0_i32_1 = arith.constant 0 : i32
    return %c0_i32, %c0_i32_0 : i32, i32
  }
  func.func @transform_4(%arg0: i32) -> (i32, i32) {
    %c0_i32 = arith.constant 0 : i32
    %c0_i32_0 = arith.constant 0 : i32
    %c0_i32_1 = arith.constant 0 : i32
    return %c0_i32, %c0_i32_0 : i32, i32
  }
  func.func @transform_5(%arg0: i32) -> (i32, i32, i32) {
    %c0_i32 = arith.constant 0 : i32
    %c0_i32_0 = arith.constant 0 : i32
    %c0_i32_1 = arith.constant 0 : i32
    return %arg0, %c0_i32, %c0_i32_0 : i32, i32, i32
  }
}

module attributes {stable_mosaic.version = 11 : i64} {
  func.func @_tcn_stack_kernel(%arg0: i32, %arg1: i32, %arg2: memref<4xi32, #tpu.memory_space<smem>>, %arg3: memref<1x14x128xf32, #tpu.memory_space<vmem>>, %arg4: memref<1x128x128xbf16, #tpu.memory_space<vmem>>, %arg5: memref<1x1x128xf32, #tpu.memory_space<vmem>>, %arg6: memref<1x1x128xf32, #tpu.memory_space<vmem>>, %arg7: memref<1x1x128xf32, #tpu.memory_space<vmem>>, %arg8: memref<1x3x128xf32, #tpu.memory_space<vmem>>, %arg9: memref<1x1x128xf32, #tpu.memory_space<vmem>>, %arg10: memref<1x1x128xf32, #tpu.memory_space<vmem>>, %arg11: memref<1x1x128xf32, #tpu.memory_space<vmem>>, %arg12: memref<1x128x256xbf16, #tpu.memory_space<vmem>>, %arg13: memref<1x1x256xf32, #tpu.memory_space<vmem>>, %arg14: memref<1x14x128xf32, #tpu.memory_space<vmem>>, %arg15: memref<14x128xf32, #tpu.memory_space<vmem>>, %arg16: memref<24x128xf32, #tpu.memory_space<vmem>>) attributes {dimension_semantics = [#tpu.dimension_semantics<parallel>, #tpu.dimension_semantics<arbitrary>], iteration_bounds = array<i64: 2, 4>, scalar_prefetch = 1 : i64, scratch_operands = 2 : i64, tpu.core_type = #tpu.core_type<tc>, window_params = [{transform_indices = @transform_0, window_bounds = array<i64: 1, 14, 128>}, {transform_indices = @transform_1, window_bounds = array<i64: 1, 128, 128>}, {transform_indices = @transform_2, window_bounds = array<i64: 1, 1, 128>}, {transform_indices = @transform_3, window_bounds = array<i64: 1, 1, 128>}, {transform_indices = @transform_4, window_bounds = array<i64: 1, 1, 128>}, {transform_indices = @transform_5, window_bounds = array<i64: 1, 3, 128>}, {transform_indices = @transform_6, window_bounds = array<i64: 1, 1, 128>}, {transform_indices = @transform_7, window_bounds = array<i64: 1, 1, 128>}, {transform_indices = @transform_8, window_bounds = array<i64: 1, 1, 128>}, {transform_indices = @transform_9, window_bounds = array<i64: 1, 128, 256>}, {transform_indices = @transform_10, window_bounds = array<i64: 1, 1, 256>}, {transform_indices = @transform_11, window_bounds = array<i64: 1, 14, 128>}]} {
    %c0_i32 = arith.constant 0 : i32
    %0 = arith.cmpi eq, %arg1, %c0_i32 : i32
    %1 = arith.extui %0 : i1 to i32
    %c0_i32_0 = arith.constant 0 : i32
    %2 = arith.cmpi ne, %1, %c0_i32_0 : i32
    scf.if %2 {
      %c0_61 = arith.constant 0 : index
      %c0_62 = arith.constant 0 : index
      %c0_63 = arith.constant 0 : index
      %122 = vector.load %arg3[%c0_61, %c0_62, %c0_63] : memref<1x14x128xf32, #tpu.memory_space<vmem>>, vector<1x14x128xf32>
      %123 = vector.shape_cast %122 : vector<1x14x128xf32> to vector<14x128xf32>
      %c0_64 = arith.constant 0 : index
      %c0_65 = arith.constant 0 : index
      %124 = vector.load %arg15[%c0_64, %c0_65] : memref<14x128xf32, #tpu.memory_space<vmem>>, vector<14x128xf32>
      tpu.vector_store %arg15[%c0_64, %c0_65], %123 {strides = array<i32>} : memref<14x128xf32, #tpu.memory_space<vmem>>, vector<14x128xf32>,
      %cst_66 = arith.constant 0.000000e+00 : f32
      %125 = vector.broadcast %cst_66 : f32 to vector<1x14x128xf32>
      %c0_67 = arith.constant 0 : index
      %c0_68 = arith.constant 0 : index
      %c0_69 = arith.constant 0 : index
      %126 = vector.load %arg14[%c0_67, %c0_68, %c0_69] : memref<1x14x128xf32, #tpu.memory_space<vmem>>, vector<1x14x128xf32>
      tpu.vector_store %arg14[%c0_67, %c0_68, %c0_69], %125 {strides = array<i32>} : memref<1x14x128xf32, #tpu.memory_space<vmem>>, vector<1x14x128xf32>,
      %cst_70 = arith.constant 0.000000e+00 : f32
      %127 = vector.broadcast %cst_70 : f32 to vector<24x128xf32>
      %c0_71 = arith.constant 0 : index
      %c0_72 = arith.constant 0 : index
      %128 = vector.load %arg16[%c0_71, %c0_72] : memref<24x128xf32, #tpu.memory_space<vmem>>, vector<24x128xf32>
      tpu.vector_store %arg16[%c0_71, %c0_72], %127 {strides = array<i32>} : memref<24x128xf32, #tpu.memory_space<vmem>>, vector<24x128xf32>,
    } else {
    }
    %c0 = arith.constant 0 : index
    %c0_1 = arith.constant 0 : index
    %3 = vector.load %arg15[%c0, %c0_1] : memref<14x128xf32, #tpu.memory_space<vmem>>, vector<14x128xf32>
    %4 = arith.index_cast %arg1 : i32 to index
    %5 = memref.load %arg2[%4] : memref<4xi32, #tpu.memory_space<smem>>
    %6 = arith.truncf %3 : vector<14x128xf32> to vector<14x128xbf16>
    %c0_2 = arith.constant 0 : index
    %c0_3 = arith.constant 0 : index
    %c0_4 = arith.constant 0 : index
    %7 = vector.load %arg4[%c0_2, %c0_3, %c0_4] : memref<1x128x128xbf16, #tpu.memory_space<vmem>>, vector<1x128x128xbf16>
    %8 = vector.shape_cast %7 : vector<1x128x128xbf16> to vector<128x128xbf16>
    %cst = arith.constant dense<0.000000e+00> : vector<14x128xf32>
    %9 = tpu.matmul %6, %8, %cst {dimension_numbers = #tpu.dot_dimension_numbers<[1], [0], [0], [1], [0, 0, 1, 1], [], []>} : vector<14x128xbf16>, vector<128x128xbf16>, vector<14x128xf32> -> vector<14x128xf32>
    %c0_5 = arith.constant 0 : index
    %c0_6 = arith.constant 0 : index
    %c0_7 = arith.constant 0 : index
    %10 = vector.load %arg5[%c0_5, %c0_6, %c0_7] : memref<1x1x128xf32, #tpu.memory_space<vmem>>, vector<1x1x128xf32>
    %11 = vector.shape_cast %10 : vector<1x1x128xf32> to vector<1x128xf32>
    %12 = vector.broadcast %11 : vector<1x128xf32> to vector<14x128xf32>
    %13 = arith.addf %9, %12 : vector<14x128xf32>
    %cst_8 = arith.constant 0.000000e+00 : f32
    %14 = vector.broadcast %cst_8 : f32 to vector<14x128xf32>
    %15 = arith.cmpf oge, %13, %14 : vector<14x128xf32>
    %cst_9 = arith.constant 2.500000e-01 : f32
    %16 = vector.broadcast %cst_9 : f32 to vector<14x128xf32>
    %17 = arith.mulf %16, %13 : vector<14x128xf32>
    %18 = arith.select %15, %13, %17 : vector<14x128xi1>, vector<14x128xf32>
    %19 = vector.shape_cast %18 : vector<14x128xf32> to vector<1x14x128xf32>
    %cst_10 = arith.constant dense<0.000000e+00> : vector<1xf32>
    %20 = vector.multi_reduction <add>, %19, %cst_10 [1, 2] : vector<1x14x128xf32> to vector<1xf32>
    %21 = vector.shape_cast %20 : vector<1xf32> to vector<1x1x1xf32>
    %22 = vector.extract %21[0, 0, 0] : f32 from vector<1x1x1xf32>
    %cst_11 = arith.constant 8.960000e+02 : f32
    %23 = arith.divf %22, %cst_11 : f32
    %24 = arith.mulf %18, %18 : vector<14x128xf32>
    %25 = vector.shape_cast %24 : vector<14x128xf32> to vector<1x14x128xf32>
    %cst_12 = arith.constant dense<0.000000e+00> : vector<1xf32>
    %26 = vector.multi_reduction <add>, %25, %cst_12 [1, 2] : vector<1x14x128xf32> to vector<1xf32>
    %27 = vector.shape_cast %26 : vector<1xf32> to vector<1x1x1xf32>
    %28 = vector.extract %27[0, 0, 0] : f32 from vector<1x1x1xf32>
    %cst_13 = arith.constant 8.960000e+02 : f32
    %29 = arith.divf %28, %cst_13 : f32
    %30 = arith.mulf %23, %23 : f32
    %31 = arith.subf %29, %30 : f32
    %cst_14 = arith.constant 0.000000e+00 : f32
    %32 = arith.maximumf %31, %cst_14 : f32
    %33 = vector.broadcast %23 : f32 to vector<14x128xf32>
    %34 = arith.subf %18, %33 : vector<14x128xf32>
    %cst_15 = arith.constant 9.99999993E-9 : f32
    %35 = arith.addf %32, %cst_15 : f32
    %36 = math.rsqrt %35 : f32
    %37 = vector.broadcast %36 : f32 to vector<14x128xf32>
    %38 = arith.mulf %34, %37 : vector<14x128xf32>
    %c0_16 = arith.constant 0 : index
    %c0_17 = arith.constant 0 : index
    %c0_18 = arith.constant 0 : index
    %39 = vector.load %arg6[%c0_16, %c0_17, %c0_18] : memref<1x1x128xf32, #tpu.memory_space<vmem>>, vector<1x1x128xf32>
    %40 = vector.shape_cast %39 : vector<1x1x128xf32> to vector<1x128xf32>
    %41 = vector.broadcast %40 : vector<1x128xf32> to vector<14x128xf32>
    %42 = arith.mulf %38, %41 : vector<14x128xf32>
    %c0_19 = arith.constant 0 : index
    %c0_20 = arith.constant 0 : index
    %c0_21 = arith.constant 0 : index
    %43 = vector.load %arg7[%c0_19, %c0_20, %c0_21] : memref<1x1x128xf32, #tpu.memory_space<vmem>>, vector<1x1x128xf32>
    %44 = vector.shape_cast %43 : vector<1x1x128xf32> to vector<1x128xf32>
    %45 = vector.broadcast %44 : vector<1x128xf32> to vector<14x128xf32>
    %46 = arith.addf %42, %45 : vector<14x128xf32>
    %c8 = arith.constant 8 : index
    %c0_22 = arith.constant 0 : index
    %47 = vector.load %arg16[%c8, %c0_22] : memref<24x128xf32, #tpu.memory_space<vmem>>, vector<14x128xf32>
    tpu.vector_store %arg16[%c8, %c0_22], %46 {strides = array<i32>} : memref<24x128xf32, #tpu.memory_space<vmem>>, vector<14x128xf32>,
    %c0_23 = arith.constant 0 : index
    %c0_24 = arith.constant 0 : index
    %c0_25 = arith.constant 0 : index
    %48 = vector.load %arg8[%c0_23, %c0_24, %c0_25] : memref<1x3x128xf32, #tpu.memory_space<vmem>>, vector<1x3x128xf32>
    %49 = vector.shape_cast %48 : vector<1x3x128xf32> to vector<3x128xf32>
    %c8_i32 = arith.constant 8 : i32
    %50 = arith.subi %c8_i32, %5 : i32
    %51 = arith.index_cast %50 : i32 to index
    %c0_26 = arith.constant 0 : index
    %52 = vector.load %arg16[%51, %c0_26] : memref<24x128xf32, #tpu.memory_space<vmem>>, vector<14x128xf32>
    %c8_i32_27 = arith.constant 8 : i32
    %53 = arith.addi %c8_i32_27, %5 : i32
    %54 = arith.index_cast %53 : i32 to index
    %c0_28 = arith.constant 0 : index
    %55 = vector.load %arg16[%54, %c0_28] : memref<24x128xf32, #tpu.memory_space<vmem>>, vector<14x128xf32>
    %56 = vector.extract_strided_slice %49 {offsets = [0, 0], sizes = [1, 128], strides = [1, 1]} : vector<3x128xf32> to vector<1x128xf32>
    %57 = vector.broadcast %56 : vector<1x128xf32> to vector<14x128xf32>
    %58 = arith.mulf %52, %57 : vector<14x128xf32>
    %59 = vector.extract_strided_slice %49 {offsets = [1, 0], sizes = [1, 128], strides = [1, 1]} : vector<3x128xf32> to vector<1x128xf32>
    %60 = vector.broadcast %59 : vector<1x128xf32> to vector<14x128xf32>
    %61 = arith.mulf %46, %60 : vector<14x128xf32>
    %62 = arith.addf %58, %61 : vector<14x128xf32>
    %63 = vector.extract_strided_slice %49 {offsets = [2, 0], sizes = [1, 128], strides = [1, 1]} : vector<3x128xf32> to vector<1x128xf32>
    %64 = vector.broadcast %63 : vector<1x128xf32> to vector<14x128xf32>
    %65 = arith.mulf %55, %64 : vector<14x128xf32>
    %66 = arith.addf %62, %65 : vector<14x128xf32>
    %c0_29 = arith.constant 0 : index
    %c0_30 = arith.constant 0 : index
    %c0_31 = arith.constant 0 : index
    %67 = vector.load %arg9[%c0_29, %c0_30, %c0_31] : memref<1x1x128xf32, #tpu.memory_space<vmem>>, vector<1x1x128xf32>
    %68 = vector.shape_cast %67 : vector<1x1x128xf32> to vector<1x128xf32>
    %69 = vector.broadcast %68 : vector<1x128xf32> to vector<14x128xf32>
    %70 = arith.addf %66, %69 : vector<14x128xf32>
    %cst_32 = arith.constant 0.000000e+00 : f32
    %71 = vector.broadcast %cst_32 : f32 to vector<14x128xf32>
    %72 = arith.cmpf oge, %70, %71 : vector<14x128xf32>
    %cst_33 = arith.constant 2.500000e-01 : f32
    %73 = vector.broadcast %cst_33 : f32 to vector<14x128xf32>
    %74 = arith.mulf %73, %70 : vector<14x128xf32>
    %75 = arith.select %72, %70, %74 : vector<14x128xi1>, vector<14x128xf32>
    %76 = vector.shape_cast %75 : vector<14x128xf32> to vector<1x14x128xf32>
    %cst_34 = arith.constant dense<0.000000e+00> : vector<1xf32>
    %77 = vector.multi_reduction <add>, %76, %cst_34 [1, 2] : vector<1x14x128xf32> to vector<1xf32>
    %78 = vector.shape_cast %77 : vector<1xf32> to vector<1x1x1xf32>
    %79 = vector.extract %78[0, 0, 0] : f32 from vector<1x1x1xf32>
    %cst_35 = arith.constant 8.960000e+02 : f32
    %80 = arith.divf %79, %cst_35 : f32
    %81 = arith.mulf %75, %75 : vector<14x128xf32>
    %82 = vector.shape_cast %81 : vector<14x128xf32> to vector<1x14x128xf32>
    %cst_36 = arith.constant dense<0.000000e+00> : vector<1xf32>
    %83 = vector.multi_reduction <add>, %82, %cst_36 [1, 2] : vector<1x14x128xf32> to vector<1xf32>
    %84 = vector.shape_cast %83 : vector<1xf32> to vector<1x1x1xf32>
    %85 = vector.extract %84[0, 0, 0] : f32 from vector<1x1x1xf32>
    %cst_37 = arith.constant 8.960000e+02 : f32
    %86 = arith.divf %85, %cst_37 : f32
    %87 = arith.mulf %80, %80 : f32
    %88 = arith.subf %86, %87 : f32
    %cst_38 = arith.constant 0.000000e+00 : f32
    %89 = arith.maximumf %88, %cst_38 : f32
    %90 = vector.broadcast %80 : f32 to vector<14x128xf32>
    %91 = arith.subf %75, %90 : vector<14x128xf32>
    %cst_39 = arith.constant 9.99999993E-9 : f32
    %92 = arith.addf %89, %cst_39 : f32
    %93 = math.rsqrt %92 : f32
    %94 = vector.broadcast %93 : f32 to vector<14x128xf32>
    %95 = arith.mulf %91, %94 : vector<14x128xf32>
    %c0_40 = arith.constant 0 : index
    %c0_41 = arith.constant 0 : index
    %c0_42 = arith.constant 0 : index
    %96 = vector.load %arg10[%c0_40, %c0_41, %c0_42] : memref<1x1x128xf32, #tpu.memory_space<vmem>>, vector<1x1x128xf32>
    %97 = vector.shape_cast %96 : vector<1x1x128xf32> to vector<1x128xf32>
    %98 = vector.broadcast %97 : vector<1x128xf32> to vector<14x128xf32>
    %99 = arith.mulf %95, %98 : vector<14x128xf32>
    %c0_43 = arith.constant 0 : index
    %c0_44 = arith.constant 0 : index
    %c0_45 = arith.constant 0 : index
    %100 = vector.load %arg11[%c0_43, %c0_44, %c0_45] : memref<1x1x128xf32, #tpu.memory_space<vmem>>, vector<1x1x128xf32>
    %101 = vector.shape_cast %100 : vector<1x1x128xf32> to vector<1x128xf32>
    %102 = vector.broadcast %101 : vector<1x128xf32> to vector<14x128xf32>
    %103 = arith.addf %99, %102 : vector<14x128xf32>
    %104 = arith.truncf %103 : vector<14x128xf32> to vector<14x128xbf16>
    %c0_46 = arith.constant 0 : index
    %c0_47 = arith.constant 0 : index
    %c0_48 = arith.constant 0 : index
    %105 = vector.load %arg12[%c0_46, %c0_47, %c0_48] : memref<1x128x256xbf16, #tpu.memory_space<vmem>>, vector<1x128x256xbf16>
    %106 = vector.shape_cast %105 : vector<1x128x256xbf16> to vector<128x256xbf16>
    %cst_49 = arith.constant dense<0.000000e+00> : vector<14x256xf32>
    %107 = tpu.matmul %104, %106, %cst_49 {dimension_numbers = #tpu.dot_dimension_numbers<[1], [0], [0], [1], [0, 0, 1, 1], [], []>} : vector<14x128xbf16>, vector<128x256xbf16>, vector<14x256xf32> -> vector<14x256xf32>
    %c0_50 = arith.constant 0 : index
    %c0_51 = arith.constant 0 : index
    %c0_52 = arith.constant 0 : index
    %108 = vector.load %arg13[%c0_50, %c0_51, %c0_52] : memref<1x1x256xf32, #tpu.memory_space<vmem>>, vector<1x1x256xf32>
    %109 = vector.shape_cast %108 : vector<1x1x256xf32> to vector<1x256xf32>
    %110 = vector.broadcast %109 : vector<1x256xf32> to vector<14x256xf32>
    %111 = arith.addf %107, %110 : vector<14x256xf32>
    %112 = vector.extract_strided_slice %111 {offsets = [0, 0], sizes = [14, 128], strides = [1, 1]} : vector<14x256xf32> to vector<14x128xf32>
    %113 = arith.addf %3, %112 : vector<14x128xf32>
    %c0_53 = arith.constant 0 : index
    %c0_54 = arith.constant 0 : index
    %114 = vector.load %arg15[%c0_53, %c0_54] : memref<14x128xf32, #tpu.memory_space<vmem>>, vector<14x128xf32>
    tpu.vector_store %arg15[%c0_53, %c0_54], %113 {strides = array<i32>} : memref<14x128xf32, #tpu.memory_space<vmem>>, vector<14x128xf32>,
    %c0_55 = arith.constant 0 : index
    %c0_56 = arith.constant 0 : index
    %c0_57 = arith.constant 0 : index
    %115 = vector.load %arg14[%c0_55, %c0_56, %c0_57] : memref<1x14x128xf32, #tpu.memory_space<vmem>>, vector<1x14x128xf32>
    %116 = vector.shape_cast %115 : vector<1x14x128xf32> to vector<14x128xf32>
    %117 = vector.extract_strided_slice %111 {offsets = [0, 128], sizes = [14, 128], strides = [1, 1]} : vector<14x256xf32> to vector<14x128xf32>
    %118 = arith.addf %116, %117 : vector<14x128xf32>
    %c0_58 = arith.constant 0 : index
    %c0_59 = arith.constant 0 : index
    %c0_60 = arith.constant 0 : index
    %119 = vector.load %arg14[%c0_58, %c0_59, %c0_60] : memref<1x14x128xf32, #tpu.memory_space<vmem>>, vector<1x14x128xf32>
    %120 = vector.shape_cast %119 : vector<1x14x128xf32> to vector<14x128xf32>
    %121 = vector.shape_cast %118 : vector<14x128xf32> to vector<1x14x128xf32>
    tpu.vector_store %arg14[%c0_58, %c0_59, %c0_60], %121 {strides = array<i32>} : memref<1x14x128xf32, #tpu.memory_space<vmem>>, vector<1x14x128xf32>,
    return
  }
  func.func @transform_0(%arg0: i32, %arg1: i32, %arg2: memref<4xi32, #tpu.memory_space<smem>>) -> (i32, i32, i32) {
    %c0_i32 = arith.constant 0 : i32
    %c0_i32_0 = arith.constant 0 : i32
    %c0_i32_1 = arith.constant 0 : i32
    return %arg0, %c0_i32, %c0_i32_0 : i32, i32, i32
  }
  func.func @transform_1(%arg0: i32, %arg1: i32, %arg2: memref<4xi32, #tpu.memory_space<smem>>) -> (i32, i32, i32) {
    %c0_i32 = arith.constant 0 : i32
    %c0_i32_0 = arith.constant 0 : i32
    %c0_i32_1 = arith.constant 0 : i32
    return %arg1, %c0_i32, %c0_i32_0 : i32, i32, i32
  }
  func.func @transform_2(%arg0: i32, %arg1: i32, %arg2: memref<4xi32, #tpu.memory_space<smem>>) -> (i32, i32, i32) {
    %c0_i32 = arith.constant 0 : i32
    %c0_i32_0 = arith.constant 0 : i32
    %c0_i32_1 = arith.constant 0 : i32
    return %arg1, %c0_i32, %c0_i32_0 : i32, i32, i32
  }
  func.func @transform_3(%arg0: i32, %arg1: i32, %arg2: memref<4xi32, #tpu.memory_space<smem>>) -> (i32, i32, i32) {
    %c0_i32 = arith.constant 0 : i32
    %c0_i32_0 = arith.constant 0 : i32
    %c0_i32_1 = arith.constant 0 : i32
    return %arg1, %c0_i32, %c0_i32_0 : i32, i32, i32
  }
  func.func @transform_4(%arg0: i32, %arg1: i32, %arg2: memref<4xi32, #tpu.memory_space<smem>>) -> (i32, i32, i32) {
    %c0_i32 = arith.constant 0 : i32
    %c0_i32_0 = arith.constant 0 : i32
    %c0_i32_1 = arith.constant 0 : i32
    return %arg1, %c0_i32, %c0_i32_0 : i32, i32, i32
  }
  func.func @transform_5(%arg0: i32, %arg1: i32, %arg2: memref<4xi32, #tpu.memory_space<smem>>) -> (i32, i32, i32) {
    %c0_i32 = arith.constant 0 : i32
    %c0_i32_0 = arith.constant 0 : i32
    %c0_i32_1 = arith.constant 0 : i32
    return %arg1, %c0_i32, %c0_i32_0 : i32, i32, i32
  }
  func.func @transform_6(%arg0: i32, %arg1: i32, %arg2: memref<4xi32, #tpu.memory_space<smem>>) -> (i32, i32, i32) {
    %c0_i32 = arith.constant 0 : i32
    %c0_i32_0 = arith.constant 0 : i32
    %c0_i32_1 = arith.constant 0 : i32
    return %arg1, %c0_i32, %c0_i32_0 : i32, i32, i32
  }
  func.func @transform_7(%arg0: i32, %arg1: i32, %arg2: memref<4xi32, #tpu.memory_space<smem>>) -> (i32, i32, i32) {
    %c0_i32 = arith.constant 0 : i32
    %c0_i32_0 = arith.constant 0 : i32
    %c0_i32_1 = arith.constant 0 : i32
    return %arg1, %c0_i32, %c0_i32_0 : i32, i32, i32
  }
  func.func @transform_8(%arg0: i32, %arg1: i32, %arg2: memref<4xi32, #tpu.memory_space<smem>>) -> (i32, i32, i32) {
    %c0_i32 = arith.constant 0 : i32
    %c0_i32_0 = arith.constant 0 : i32
    %c0_i32_1 = arith.constant 0 : i32
    return %arg1, %c0_i32, %c0_i32_0 : i32, i32, i32
  }
  func.func @transform_9(%arg0: i32, %arg1: i32, %arg2: memref<4xi32, #tpu.memory_space<smem>>) -> (i32, i32, i32) {
    %c0_i32 = arith.constant 0 : i32
    %c0_i32_0 = arith.constant 0 : i32
    %c0_i32_1 = arith.constant 0 : i32
    return %arg1, %c0_i32, %c0_i32_0 : i32, i32, i32
  }
  func.func @transform_10(%arg0: i32, %arg1: i32, %arg2: memref<4xi32, #tpu.memory_space<smem>>) -> (i32, i32, i32) {
    %c0_i32 = arith.constant 0 : i32
    %c0_i32_0 = arith.constant 0 : i32
    %c0_i32_1 = arith.constant 0 : i32
    return %arg1, %c0_i32, %c0_i32_0 : i32, i32, i32
  }
  func.func @transform_11(%arg0: i32, %arg1: i32, %arg2: memref<4xi32, #tpu.memory_space<smem>>) -> (i32, i32, i32) {
    %c0_i32 = arith.constant 0 : i32
    %c0_i32_0 = arith.constant 0 : i32
    %c0_i32_1 = arith.constant 0 : i32
    return %arg0, %c0_i32, %c0_i32_0 : i32, i32, i32
  }
}

</mosaic_0001>

<llo_original>
// kernel: tasnet_forward.5
$region0: #{tasnet_forward.5}
  #allocation0 [shape = 'u32[]', space=smem, size = 0x4, offset = 0x4, fixed_abs, tag = 'smem constant byte address 0x4 - core index']
  #allocation1 [shape = 'u32[144,128]{1,0:T(1,128)}', space=vmem, size = 0x12000, scoped, tag = 'internal scratch']
  %s0 = inlined_call_operand.vmem [shape: f32[2,14,128], index: 0, kind: input, shape index: {}]
  %s1 = inlined_call_operand.vmem [shape: f32[2,14,128], index: 1, kind: input, shape index: {}]
  %s2 = inlined_call_operand.vmem [shape: bf16[128,128], index: 2, kind: input, shape index: {}]
  %s3 = inlined_call_operand.vmem [shape: f32[1,128], index: 3, kind: input, shape index: {}]
  %s4 = inlined_call_operand.vmem [shape: bf16[128,128], index: 4, kind: input, shape index: {}]
  %s5 = inlined_call_operand.vmem [shape: f32[2,14,128], index: 5, kind: output, shape index: {}]
  %s6 = sld [smem:[#allocation0]]
  $region53: #{tasnet_forward.5} parent=0
    _
  %s8 = ssub.s32 1, %s6
  %s9 = scalar_select 0, %s8, %s6
  loop: start=0, step=1, limit=4
  $region2: #{tasnet_forward.5} parent=0 // loop_pre_header
    _
  $region3: #{tasnet_forward.5} parent=0 // loop_header
    %s11 = sphi 0, %s15
    %p12 = scmp.ge.s32.totalorder %s11, 4
    %s21 = sphi 0, %s23
    %s24 = sphi 0, %s21
    %s25 = sphi 0, %s24
    %s41 = sphi 0, %s25
    %s47 = sphi 0, %s49
    %s50 = sphi 0, %s47
    %s51 = sphi 0, %s50
    %s67 = sphi 0, %s51
    %s71 = sphi 0, %s71
    %s73 = sphi 0, %s71
    %s74 = sphi 0, %s73
    %s88 = sphi 0, %s74
    %s92 = sphi 0, %s92
    %s94 = sphi 0, %s92
    %s95 = sphi 0, %s94
    %s109 = sphi 0, %s95
    %s113 = sphi 0, %s113
    %s115 = sphi 0, %s113
    %s116 = sphi 0, %s115
    %s130 = sphi 0, %s116
    %s136 = sphi 0, %s138
    %s139 = sphi 0, %s136
    %s140 = sphi 0, %s139
    %s156 = sphi 0, %s140
  $region4: #{tasnet_forward.5} parent=0 // loop_header_branch
    %14 = sbr.rel (%p12) target = $region8
  $region5: #{tasnet_forward.5} parent=0 // loop_body
    %s16 = ssub.s32 %s11, 1
    %s17 = ssub.s32 %s11, 2
    %s18 = sadd.s32 %s11, 1
    %s19 = ssub.s32 %s11, %s18
    %p20 = scmp.eq.s32.totalorder %s19, 0
    %s22 = sadd.s32 %s21, 1
    %s23 = scalar_select %p20, %s21, %s22
    %p26 = pneg %p20
    %p27 = scmp.eq.s32.totalorder %s11, 1
    %p28 = por %p26, %p27
    %p29 = scmp.ne.s32.totalorder %s21, %s24
    %p30 = scmp.eq.s32.totalorder %s11, 0
    %p31 = por %p29, %p30
    %p32 = scmp.ne.s32.totalorder %s21, %s24
    %p33 = scmp.eq.s32.totalorder %s16, 1
    %p34 = por %p32, %p33
    %p35 = scmp.ne.s32.totalorder %s24, %s25
    %p36 = scmp.eq.s32.totalorder %s16, 0
    %p37 = por %p35, %p36
    %p38 = scmp.ne.s32.totalorder %s24, %s25
    %p39 = scmp.eq.s32.totalorder %s17, 1
    %p40 = por %p38, %p39
    %p42 = scmp.ne.s32.totalorder %s25, %s41
    %p43 = scmp.eq.s32.totalorder %s17, 0
    %p44 = por %p42, %p43
    %s45 = ssub.s32 %s11, %s18
    %p46 = scmp.eq.s32.totalorder %s45, 0
    %s48 = sadd.s32 %s47, 1
    %s49 = scalar_select %p46, %s47, %s48
    %p52 = pneg %p46
    %p53 = scmp.eq.s32.totalorder %s11, 1
    %p54 = por %p52, %p53
    %p55 = scmp.ne.s32.totalorder %s47, %s50
    %p56 = scmp.eq.s32.totalorder %s11, 0
    %p57 = por %p55, %p56
    %p58 = scmp.ne.s32.totalorder %s47, %s50
    %p59 = scmp.eq.s32.totalorder %s16, 1
    %p60 = por %p58, %p59
    %p61 = scmp.ne.s32.totalorder %s50, %s51
    %p62 = scmp.eq.s32.totalorder %s16, 0
    %p63 = por %p61, %p62
    %p64 = scmp.ne.s32.totalorder %s50, %s51
    %p65 = scmp.eq.s32.totalorder %s17, 1
    %p66 = por %p64, %p65
    %p68 = scmp.ne.s32.totalorder %s51, %s67
    %p69 = scmp.eq.s32.totalorder %s17, 0
    %p70 = por %p68, %p69
    %s72 = sadd.s32 %s71, 1
    %p75 = scmp.eq.s32.totalorder %s11, 1
    %p76 = scmp.ne.s32.totalorder %s71, %s73
    %p77 = scmp.eq.s32.totalorder %s11, 0
    %p78 = por %p76, %p77
    %p79 = scmp.ne.s32.totalorder %s71, %s73
    %p80 = scmp.eq.s32.totalorder %s16, 1
    %p81 = por %p79, %p80
    %p82 = scmp.ne.s32.totalorder %s73, %s74
    %p83 = scmp.eq.s32.totalorder %s16, 0
    %p84 = por %p82, %p83
    %p85 = scmp.ne.s32.totalorder %s73, %s74
    %p86 = scmp.eq.s32.totalorder %s17, 1
    %p87 = por %p85, %p86
    %p89 = scmp.ne.s32.totalorder %s74, %s88
    %p90 = scmp.eq.s32.totalorder %s17, 0
    %p91 = por %p89, %p90
    %s93 = sadd.s32 %s92, 1
    %p96 = scmp.eq.s32.totalorder %s11, 1
    %p97 = scmp.ne.s32.totalorder %s92, %s94
    %p98 = scmp.eq.s32.totalorder %s11, 0
    %p99 = por %p97, %p98
    %p100 = scmp.ne.s32.totalorder %s92, %s94
    %p101 = scmp.eq.s32.totalorder %s16, 1
    %p102 = por %p100, %p101
    %p103 = scmp.ne.s32.totalorder %s94, %s95
    %p104 = scmp.eq.s32.totalorder %s16, 0
    %p105 = por %p103, %p104
    %p106 = scmp.ne.s32.totalorder %s94, %s95
    %p107 = scmp.eq.s32.totalorder %s17, 1
    %p108 = por %p106, %p107
    %p110 = scmp.ne.s32.totalorder %s95, %s109
    %p111 = scmp.eq.s32.totalorder %s17, 0
    %p112 = por %p110, %p111
    %s114 = sadd.s32 %s113, 1
    %p117 = scmp.eq.s32.totalorder %s11, 1
    %p118 = scmp.ne.s32.totalorder %s113, %s115
    %p119 = scmp.eq.s32.totalorder %s11, 0
    %p120 = por %p118, %p119
    %p121 = scmp.ne.s32.totalorder %s113, %s115
    %p122 = scmp.eq.s32.totalorder %s16, 1
    %p123 = por %p121, %p122
    %p124 = scmp.ne.s32.totalorder %s115, %s116
    %p125 = scmp.eq.s32.totalorder %s16, 0
    %p126 = por %p124, %p125
    %p127 = scmp.ne.s32.totalorder %s115, %s116
    %p128 = scmp.eq.s32.totalorder %s17, 1
    %p129 = por %p127, %p128
    %p131 = scmp.ne.s32.totalorder %s116, %s130
    %p132 = scmp.eq.s32.totalorder %s17, 0
    %p133 = por %p131, %p132
    %s134 = ssub.s32 %s11, %s18
    %p135 = scmp.eq.s32.totalorder %s134, 0
    %s137 = sadd.s32 %s136, 1
    %s138 = scalar_select %p135, %s136, %s137
    %p141 = pneg %p135
    %p142 = scmp.eq.s32.totalorder %s11, 1
    %p143 = por %p141, %p142
    %p144 = scmp.ne.s32.totalorder %s136, %s139
    %p145 = scmp.eq.s32.totalorder %s11, 0
    %p146 = por %p144, %p145
    %p147 = scmp.ne.s32.totalorder %s136, %s139
    %p148 = scmp.eq.s32.totalorder %s16, 1
    %p149 = por %p147, %p148
    %p150 = scmp.ne.s32.totalorder %s139, %s140
    %p151 = scmp.eq.s32.totalorder %s16, 0
    %p152 = por %p150, %p151
    %p153 = scmp.ne.s32.totalorder %s139, %s140
    %p154 = scmp.eq.s32.totalorder %s17, 1
    %p155 = por %p153, %p154
    %p157 = scmp.ne.s32.totalorder %s140, %s156
    %p158 = scmp.eq.s32.totalorder %s17, 0
    %p159 = por %p157, %p158
    %p160 = scmp.le.s32.totalorder 1, %s11
    %p161 = scmp.lt.s32.totalorder %s11, 3
    %p162 = pnand %p160, %p161
    %p163 = pneg %p162
    // Predicated region
    $region9: #{tasnet_forward.5} parent=5 // pred_check
      _
    $region10: #{tasnet_forward.5} parent=5 // pred_check_branch
      %165 = sbr.rel (%p162) target = $region12
    $region11: #{tasnet_forward.5} parent=5 // pred_region
      %s166 = ssub.s32 %s11, 1
      // Predicated region
      $region13: #{tasnet_forward.5} parent=11 // pred_check
        %p167 = pneg %p84
      $region14: #{tasnet_forward.5} parent=11 // pred_check_branch
        %169 = sbr.rel (%p167) target = $region16
      $region15: #{tasnet_forward.5} parent=11 // pred_region
        _
      $region16: #{tasnet_forward.5} parent=11 // pred_fallthru
        _
      // Predicated region
      $region17: #{tasnet_forward.5} parent=11 // pred_check
        %p170 = pneg %p105
      $region18: #{tasnet_forward.5} parent=11 // pred_check_branch
        %172 = sbr.rel (%p170) target = $region20
      $region19: #{tasnet_forward.5} parent=11 // pred_region
        _
      $region20: #{tasnet_forward.5} parent=11 // pred_fallthru
        _
      // Predicated region
      $region21: #{tasnet_forward.5} parent=11 // pred_check
        %p173 = pneg %p126
      $region22: #{tasnet_forward.5} parent=11 // pred_check_branch
        %175 = sbr.rel (%p173) target = $region24
      $region23: #{tasnet_forward.5} parent=11 // pred_region
        _
      $region24: #{tasnet_forward.5} parent=11 // pred_fallthru
        _
    $region12: #{tasnet_forward.5} parent=5 // pred_fallthru
      _
    %p176 = scmp.lt.s32.totalorder %s11, 2
    // Predicated region
    $region25: #{tasnet_forward.5} parent=5 // pred_check
      %p177 = pneg %p176
    $region26: #{tasnet_forward.5} parent=5 // pred_check_branch
      %179 = sbr.rel (%p177) target = $region28
    $region27: #{tasnet_forward.5} parent=5 // pred_region
      // Predicated region
      $region29: #{tasnet_forward.5} parent=27 // pred_check
        %p180 = pneg %p31
      $region30: #{tasnet_forward.5} parent=27 // pred_check_branch
        %182 = sbr.rel (%p180) target = $region32
      $region31: #{tasnet_forward.5} parent=27 // pred_region
        %p183 = scmp.lt.s32.totalorder %s11, 1
        %s184 = scalar_select %p183, %s11, 1
        %s185 = smul.addr %s184, 2
        %s186 = smul.addr %s185, 8
        %s187 = scalar_lea.vmem %s0, %s186
      $region32: #{tasnet_forward.5} parent=27 // pred_fallthru
        _
      // Predicated region
      $region33: #{tasnet_forward.5} parent=27 // pred_check
        %p188 = pneg %p57
      $region34: #{tasnet_forward.5} parent=27 // pred_check_branch
        %190 = sbr.rel (%p188) target = $region36
      $region35: #{tasnet_forward.5} parent=27 // pred_region
        %p191 = scmp.lt.s32.totalorder %s11, 1
        %s192 = scalar_select %p191, %s11, 1
        %s193 = smul.addr %s192, 2
        %s194 = smul.addr %s193, 8
        %s195 = scalar_lea.vmem %s1, %s194
      $region36: #{tasnet_forward.5} parent=27 // pred_fallthru
        _
    $region28: #{tasnet_forward.5} parent=5 // pred_fallthru
      _
    %p196 = scmp.le.s32.totalorder 1, %s11
    %p197 = scmp.lt.s32.totalorder %s11, 3
    %p198 = pnand %p196, %p197
    %p199 = pneg %p198
    // Predicated region
    $region37: #{tasnet_forward.5} parent=5 // pred_check
      _
    $region38: #{tasnet_forward.5} parent=5 // pred_check_branch
      %201 = sbr.rel (%p198) target = $region40
    $region39: #{tasnet_forward.5} parent=5 // pred_region
      %s202 = ssub.s32 %s11, 1
      %p203 = scmp.lt.s32.totalorder %s16, 1
      %s204 = scalar_select %p203, %s16, 1
      %s205 = smul.addr %s204, 2
      %s206 = smul.addr %s205, 8
      %s207 = scalar_lea.vmem %s0, %s206
      %p208 = pneg %p37
      %p209 = pneg %p34
      %p210 = scmp.lt.s32.totalorder %s16, 1
      %s211 = scalar_select %p210, %s16, 1
      %s212 = smul.addr %s211, 2
      %s213 = smul.addr %s212, 8
      %s214 = scalar_lea.vmem %s1, %s213
      %p215 = pneg %p63
      %p216 = pneg %p60
      %p217 = pneg %p84
      %p218 = pneg %p81
      %p219 = pneg %p105
      %p220 = pneg %p102
      %p221 = pneg %p126
      %p222 = pneg %p123
      %p223 = pneg %p152
      %p224 = pneg %p149
      %p225 = scmp.lt.s32.totalorder %s16, 1
      %s226 = scalar_select %p225, %s16, 1
      %s227 = smul.addr %s226, 2
      %s228 = smul.addr %s227, 8
      %s229 = scalar_lea.vmem %s5, %s228
      %p230 = scmp.lt.s32.totalorder %s16, 1
      %s231 = scalar_select %p230, %s16, 1
      %s232 = smul.addr %s231, 2
      %s233 = smul.addr %s232, 8
      %s234 = scalar_lea.vmem %s0, %s233
      %p235 = scmp.lt.s32.totalorder %s16, 1
      %s236 = scalar_select %p235, %s16, 1
      %s237 = smul.addr %s236, 2
      %s238 = smul.addr %s237, 8
      %s239 = scalar_lea.vmem %s1, %s238
      %p240 = scmp.lt.s32.totalorder %s16, 1
      %s241 = scalar_select %p240, %s16, 1
      %s242 = smul.addr %s241, 2
      %s243 = smul.addr %s242, 8
      %s244 = scalar_lea.vmem %s5, %s243
      %v246 = vld [vmem:[%s234] sm:$0xff]
      %v247 = vld [vmem:[%s234 + $0x8] sm:$0x3f]
      %vm248 = vcmp.ge.f32.partialorder %v246, 0.0
      %vm249 = vcmp.ge.f32.partialorder %v247, 0.0
      %v250 = vmul.f32 %v246, 0.25
      %v251 = vmul.f32 %v247, 0.25
      %v252 = vsel %vm248, %v246, %v250
      %v253 = vsel %vm249, %v247, %v251
      %v254 = vpack.c.bf16 %v253, %v252
      %v255 = vld [vmem:[%s2] sm:$0xf]
      %v256 = vld [vmem:[%s2 + $0x4] sm:$0xf]
      %v257 = vld [vmem:[%s2 + $0x8] sm:$0xf]
      %v258 = vld [vmem:[%s2 + $0xc] sm:$0xf]
      %v259 = vld [vmem:[%s2 + $0x10] sm:$0xf]
      %v260 = vld [vmem:[%s2 + $0x14] sm:$0xf]
      %v261 = vld [vmem:[%s2 + $0x18] sm:$0xf]
      %v262 = vld [vmem:[%s2 + $0x1c] sm:$0xf]
      %v263 = vld [vmem:[%s2 + $0x20] sm:$0xf]
      %v264 = vld [vmem:[%s2 + $0x24] sm:$0xf]
      %v265 = vld [vmem:[%s2 + $0x28] sm:$0xf]
      %v266 = vld [vmem:[%s2 + $0x2c] sm:$0xf]
      %v267 = vld [vmem:[%s2 + $0x30] sm:$0xf]
      %v268 = vld [vmem:[%s2 + $0x34] sm:$0xf]
      %v269 = vld [vmem:[%s2 + $0x38] sm:$0xf]
      %v270 = vld [vmem:[%s2 + $0x3c] sm:$0xf]
      %v271 = vld [vmem:[%s3] sm:$0x1]
      %v273 = vlaneseq
      %v274 = vshrl.u32 %v273, 7
      %v275 = vsub.s32 0, %v274
      %v276 = vrot.slane %v271, %v275
      %v294 = vunpack.c.l.b16 %v255
      %v295 = vunpack.c.l.b16 %v256
      %v296 = vunpack.c.l.b16 %v257
      %v297 = vunpack.c.l.b16 %v258
      %v298 = vunpack.c.l.b16 %v259
      %v299 = vunpack.c.l.b16 %v260
      %v300 = vunpack.c.l.b16 %v261
      %v301 = vunpack.c.l.b16 %v262
      %v302 = vunpack.c.l.b16 %v263
      %v303 = vunpack.c.l.b16 %v264
      %v304 = vunpack.c.l.b16 %v265
      %v305 = vunpack.c.l.b16 %v266
      %v306 = vunpack.c.l.b16 %v267
      %v307 = vunpack.c.l.b16 %v268
      %v308 = vunpack.c.l.b16 %v269
      %v309 = vunpack.c.l.b16 %v270
      %v310 = vpack.c.b16 %v295, %v294
      %v311 = vpack.c.b16 %v297, %v296
      %v312 = vpack.c.b16 %v299, %v298
      %v313 = vpack.c.b16 %v301, %v300
      %v314 = vpack.c.b16 %v303, %v302
      %v315 = vpack.c.b16 %v305, %v304
      %v316 = vpack.c.b16 %v307, %v306
      %v317 = vpack.c.b16 %v309, %v308
      %326 = vmatprep.subr.bf16.mxu0 0
      %327 = vmatpush1.bf16.msra.mxu0 %v310
      %328 = vmatprep.subr.bf16.mxu0 0
      %329 = vmatpush1.bf16.msra.mxu0 %v311
      %330 = vmatprep.subr.bf16.mxu0 0
      %331 = vmatpush1.bf16.msra.mxu0 %v312
      %332 = vmatprep.subr.bf16.mxu0 0
      %333 = vmatpush1.bf16.msra.mxu0 %v313
      %334 = vmatprep.subr.bf16.mxu0 0
      %335 = vmatpush1.bf16.msra.mxu0 %v314
      %336 = vmatprep.subr.bf16.mxu0 0
      %337 = vmatpush1.bf16.msra.mxu0 %v315
      %338 = vmatprep.subr.bf16.mxu0 0
      %339 = vmatpush1.bf16.msra.mxu0 %v316
      %340 = vmatprep.subr.bf16.mxu0 0
      %341 = vmatpush1.bf16.msra.mxu0 %v317
      %342 = vmatprep.subr.bf16.mxu0 0
      %343 = vmatpush1.bf16.msra.mxu0 0
      %344 = vmatprep.subr.bf16.mxu0 0
      %345 = vmatpush1.bf16.msra.mxu0 0
      %346 = vmatprep.subr.bf16.mxu0 0
      %347 = vmatpush1.bf16.msra.mxu0 0
      %348 = vmatprep.subr.bf16.mxu0 0
      %349 = vmatpush1.bf16.msra.mxu0 0
      %350 = vmatprep.subr.bf16.mxu0 0
      %351 = vmatpush1.bf16.msra.mxu0 0
      %352 = vmatprep.subr.bf16.mxu0 0
      %353 = vmatpush1.bf16.msra.mxu0 0
      %354 = vmatprep.subr.bf16.mxu0 0
      %355 = vmatpush1.bf16.msra.mxu0 0
      %356 = vmatprep.subr.bf16.mxu0 0
      %357 = vmatpush1.bf16.msra.mxu0 0
      %358 = vmatprep.mubr.bf16.mxu0 0
      %359 = vmatmul.mubr.bf16.gmra.mrb[0].mxu0 %v254
      %v360 = vpop.f32.mrb[0].mxu0
      %v361 = vadd.f32 %v276, %v360
      %v362 = vpop.f32.mrb[0].mxu0
      %v363 = vpop.f32.mrb[0].mxu0
      %v364 = vadd.f32 %v276, %v363
      %v365 = vpop.f32.mrb[0].mxu0
      %366 = vdwg.mxu0
      %v367 = vxor.u32 %v361, 2147483648
      %v368 = vxor.u32 %v364, 2147483648
      %v369 = vmul.f32 %v367, 1.442695
      %v370 = vpow.pop %v369
      %v371 = vmul.f32 %v368, 1.442695
      %v372 = vpow.pop %v371
      %v373 = vadd.f32 %v370, 1.0
      %v374 = vadd.f32 %v372, 1.0
      %v375 = vrcp.pop %v373
      %v376 = vmul.f32 1.0, %v375
      %v377 = vrcp.pop %v374
      %v378 = vmul.f32 1.0, %v377
      %v379 = vld [vmem:[%s239] sm:$0xff]
      %v380 = vld [vmem:[%s239 + $0x8] sm:$0x3f]
      %v381 = vmul.f32 %v376, %v379
      %v382 = vmul.f32 %v378, %v380
      %v383 = vpack.c.bf16 %v382, %v381
      %v384 = vld [vmem:[%s4] sm:$0xf]
      %v385 = vld [vmem:[%s4 + $0x4] sm:$0xf]
      %v386 = vld [vmem:[%s4 + $0x8] sm:$0xf]
      %v387 = vld [vmem:[%s4 + $0xc] sm:$0xf]
      %v388 = vld [vmem:[%s4 + $0x10] sm:$0xf]
      %v389 = vld [vmem:[%s4 + $0x14] sm:$0xf]
      %v390 = vld [vmem:[%s4 + $0x18] sm:$0xf]
      %v391 = vld [vmem:[%s4 + $0x1c] sm:$0xf]
      %v392 = vld [vmem:[%s4 + $0x20] sm:$0xf]
      %v393 = vld [vmem:[%s4 + $0x24] sm:$0xf]
      %v394 = vld [vmem:[%s4 + $0x28] sm:$0xf]
      %v395 = vld [vmem:[%s4 + $0x2c] sm:$0xf]
      %v396 = vld [vmem:[%s4 + $0x30] sm:$0xf]
      %v397 = vld [vmem:[%s4 + $0x34] sm:$0xf]
      %v398 = vld [vmem:[%s4 + $0x38] sm:$0xf]
      %v399 = vld [vmem:[%s4 + $0x3c] sm:$0xf]
      %v416 = vunpack.c.l.b16 %v384
      %v417 = vunpack.c.l.b16 %v385
      %v418 = vunpack.c.l.b16 %v386
      %v419 = vunpack.c.l.b16 %v387
      %v420 = vunpack.c.l.b16 %v388
      %v421 = vunpack.c.l.b16 %v389
      %v422 = vunpack.c.l.b16 %v390
      %v423 = vunpack.c.l.b16 %v391
      %v424 = vunpack.c.l.b16 %v392
      %v425 = vunpack.c.l.b16 %v393
      %v426 = vunpack.c.l.b16 %v394
      %v427 = vunpack.c.l.b16 %v395
      %v428 = vunpack.c.l.b16 %v396
      %v429 = vunpack.c.l.b16 %v397
      %v430 = vunpack.c.l.b16 %v398
      %v431 = vunpack.c.l.b16 %v399
      %v432 = vpack.c.b16 %v417, %v416
      %v433 = vpack.c.b16 %v419, %v418
      %v434 = vpack.c.b16 %v421, %v420
      %v435 = vpack.c.b16 %v423, %v422
      %v436 = vpack.c.b16 %v425, %v424
      %v437 = vpack.c.b16 %v427, %v426
      %v438 = vpack.c.b16 %v429, %v428
      %v439 = vpack.c.b16 %v431, %v430
      %448 = vmatprep.subr.bf16.mxu0 0
      %449 = vmatpush1.bf16.msra.mxu0 %v432
      %450 = vmatprep.subr.bf16.mxu0 0
      %451 = vmatpush1.bf16.msra.mxu0 %v433
      %452 = vmatprep.subr.bf16.mxu0 0
      %453 = vmatpush1.bf16.msra.mxu0 %v434
      %454 = vmatprep.subr.bf16.mxu0 0
      %455 = vmatpush1.bf16.msra.mxu0 %v435
      %456 = vmatprep.subr.bf16.mxu0 0
      %457 = vmatpush1.bf16.msra.mxu0 %v436
      %458 = vmatprep.subr.bf16.mxu0 0
      %459 = vmatpush1.bf16.msra.mxu0 %v437
      %460 = vmatprep.subr.bf16.mxu0 0
      %461 = vmatpush1.bf16.msra.mxu0 %v438
      %462 = vmatprep.subr.bf16.mxu0 0
      %463 = vmatpush1.bf16.msra.mxu0 %v439
      %464 = vmatprep.subr.bf16.mxu0 0
      %465 = vmatpush1.bf16.msra.mxu0 0
      %466 = vmatprep.subr.bf16.mxu0 0
      %467 = vmatpush1.bf16.msra.mxu0 0
      %468 = vmatprep.subr.bf16.mxu0 0
      %469 = vmatpush1.bf16.msra.mxu0 0
      %470 = vmatprep.subr.bf16.mxu0 0
      %471 = vmatpush1.bf16.msra.mxu0 0
      %472 = vmatprep.subr.bf16.mxu0 0
      %473 = vmatpush1.bf16.msra.mxu0 0
      %474 = vmatprep.subr.bf16.mxu0 0
      %475 = vmatpush1.bf16.msra.mxu0 0
      %476 = vmatprep.subr.bf16.mxu0 0
      %477 = vmatpush1.bf16.msra.mxu0 0
      %478 = vmatprep.subr.bf16.mxu0 0
      %479 = vmatpush1.bf16.msra.mxu0 0
      %480 = vmatprep.mubr.bf16.mxu0 0
      %481 = vmatmul.mubr.bf16.gmra.mrb[0].mxu0 %v383
      %v482 = vpop.f32.mrb[0].mxu0
      %v483 = vadd.f32 0.0, %v482
      %v484 = vpop.f32.mrb[0].mxu0
      %v485 = vpop.f32.mrb[0].mxu0
      %v486 = vadd.f32 0.0, %v485
      %v487 = vpop.f32.mrb[0].mxu0
      %488 = vdwg.mxu0
      %489 = vst [vmem:[%s244] sm:$0xff] %v483
      %490 = vst [vmem:[%s244 + $0x8] sm:$0x3f] %v486
      %p491 = scmp.lt.s32.totalorder %s16, 1
      %s492 = scalar_select %p491, %s16, 1
      %s493 = smul.addr %s492, 2
      %s494 = smul.addr %s493, 8
      %s495 = scalar_lea.vmem %s5, %s494
      // Predicated region
      $region41: #{tasnet_forward.5} parent=39 // pred_check
        %p496 = pneg %p149
      $region42: #{tasnet_forward.5} parent=39 // pred_check_branch
        %498 = sbr.rel (%p496) target = $region44
      $region43: #{tasnet_forward.5} parent=39 // pred_region
        _
      $region44: #{tasnet_forward.5} parent=39 // pred_fallthru
        _
    $region40: #{tasnet_forward.5} parent=5 // pred_fallthru
      _
    %p499 = scmp.le.s32.totalorder 2, %s11
    // Predicated region
    $region45: #{tasnet_forward.5} parent=5 // pred_check
      %p500 = pneg %p499
    $region46: #{tasnet_forward.5} parent=5 // pred_check_branch
      %502 = sbr.rel (%p500) target = $region48
    $region47: #{tasnet_forward.5} parent=5 // pred_region
      %s503 = ssub.s32 %s11, 2
      // Predicated region
      $region49: #{tasnet_forward.5} parent=47 // pred_check
        %p504 = pneg %p155
      $region50: #{tasnet_forward.5} parent=47 // pred_check_branch
        %506 = sbr.rel (%p504) target = $region52
      $region51: #{tasnet_forward.5} parent=47 // pred_region
        %p507 = scmp.lt.s32.totalorder %s17, 1
        %s508 = scalar_select %p507, %s17, 1
        %s509 = smul.addr %s508, 2
        %s510 = smul.addr %s509, 8
        %s511 = scalar_lea.vmem %s5, %s510
      $region52: #{tasnet_forward.5} parent=47 // pred_fallthru
        _
    $region48: #{tasnet_forward.5} parent=5 // pred_fallthru
      _
  $region6: #{tasnet_forward.5} parent=0 // loop_footer
    %s15 = sadd.s32 1, %s11
  $region7: #{tasnet_forward.5} parent=0 // loop_footer_branch
    %10 = sbr.rel target = $region3
  $region8: #{tasnet_forward.5} parent=0 // loop_exit
    _

// kernel: tasnet_forward.3
$region0: #{tasnet_forward.3}
  #allocation0 [shape = 'u32[]', space=smem, size = 0x4, offset = 0x4, fixed_abs, tag = 'smem constant byte address 0x4 - core index']
  #allocation1 [shape = 'u32[144,128]{1,0:T(1,128)}', space=vmem, size = 0x12000, scoped, tag = 'internal scratch']
  %s0 = inlined_call_operand.vmem [shape: f32[2,14,32], index: 0, kind: input, shape index: {}]
  %s1 = inlined_call_operand.vmem [shape: bf16[32,128], index: 1, kind: input, shape index: {}]
  %s2 = inlined_call_operand.vmem [shape: f32[1,128], index: 2, kind: input, shape index: {}]
  %s3 = inlined_call_operand.vmem [shape: f32[1,128], index: 3, kind: input, shape index: {}]
  %s4 = inlined_call_operand.vmem [shape: bf16[128,128], index: 4, kind: input, shape index: {}]
  %s5 = inlined_call_operand.vmem [shape: f32[1,128], index: 5, kind: input, shape index: {}]
  %s6 = inlined_call_operand.vmem [shape: f32[2,14,128], index: 6, kind: output, shape index: {0}]
  %s7 = inlined_call_operand.vmem [shape: f32[2,14,128], index: 7, kind: output, shape index: {1}]
  %8 = xla_tuple %s6, %s7
  %s9 = sld [smem:[#allocation0]]
  $region65: #{tasnet_forward.3} parent=0
    _
  %s11 = ssub.s32 1, %s9
  %s12 = scalar_select 0, %s11, %s9
  loop: start=0, step=1, limit=4
  $region2: #{tasnet_forward.3} parent=0 // loop_pre_header
    _
  $region3: #{tasnet_forward.3} parent=0 // loop_header
    %s14 = sphi 0, %s18
    %p15 = scmp.ge.s32.totalorder %s14, 4
    %s24 = sphi 0, %s26
    %s27 = sphi 0, %s24
    %s28 = sphi 0, %s27
    %s44 = sphi 0, %s28
    %s48 = sphi 0, %s48
    %s50 = sphi 0, %s48
    %s51 = sphi 0, %s50
    %s65 = sphi 0, %s51
    %s69 = sphi 0, %s69
    %s71 = sphi 0, %s69
    %s72 = sphi 0, %s71
    %s86 = sphi 0, %s72
    %s90 = sphi 0, %s90
    %s92 = sphi 0, %s90
    %s93 = sphi 0, %s92
    %s107 = sphi 0, %s93
    %s111 = sphi 0, %s111
    %s113 = sphi 0, %s111
    %s114 = sphi 0, %s113
    %s128 = sphi 0, %s114
    %s132 = sphi 0, %s132
    %s134 = sphi 0, %s132
    %s135 = sphi 0, %s134
    %s149 = sphi 0, %s135
    %s155 = sphi 0, %s157
    %s158 = sphi 0, %s155
    %s159 = sphi 0, %s158
    %s175 = sphi 0, %s159
    %s181 = sphi 0, %s183
    %s184 = sphi 0, %s181
    %s185 = sphi 0, %s184
    %s201 = sphi 0, %s185
  $region4: #{tasnet_forward.3} parent=0 // loop_header_branch
    %17 = sbr.rel (%p15) target = $region8
  $region5: #{tasnet_forward.3} parent=0 // loop_body
    %s19 = ssub.s32 %s14, 1
    %s20 = ssub.s32 %s14, 2
    %s21 = sadd.s32 %s14, 1
    %s22 = ssub.s32 %s14, %s21
    %p23 = scmp.eq.s32.totalorder %s22, 0
    %s25 = sadd.s32 %s24, 1
    %s26 = scalar_select %p23, %s24, %s25
    %p29 = pneg %p23
    %p30 = scmp.eq.s32.totalorder %s14, 1
    %p31 = por %p29, %p30
    %p32 = scmp.ne.s32.totalorder %s24, %s27
    %p33 = scmp.eq.s32.totalorder %s14, 0
    %p34 = por %p32, %p33
    %p35 = scmp.ne.s32.totalorder %s24, %s27
    %p36 = scmp.eq.s32.totalorder %s19, 1
    %p37 = por %p35, %p36
    %p38 = scmp.ne.s32.totalorder %s27, %s28
    %p39 = scmp.eq.s32.totalorder %s19, 0
    %p40 = por %p38, %p39
    %p41 = scmp.ne.s32.totalorder %s27, %s28
    %p42 = scmp.eq.s32.totalorder %s20, 1
    %p43 = por %p41, %p42
    %p45 = scmp.ne.s32.totalorder %s28, %s44
    %p46 = scmp.eq.s32.totalorder %s20, 0
    %p47 = por %p45, %p46
    %s49 = sadd.s32 %s48, 1
    %p52 = scmp.eq.s32.totalorder %s14, 1
    %p53 = scmp.ne.s32.totalorder %s48, %s50
    %p54 = scmp.eq.s32.totalorder %s14, 0
    %p55 = por %p53, %p54
    %p56 = scmp.ne.s32.totalorder %s48, %s50
    %p57 = scmp.eq.s32.totalorder %s19, 1
    %p58 = por %p56, %p57
    %p59 = scmp.ne.s32.totalorder %s50, %s51
    %p60 = scmp.eq.s32.totalorder %s19, 0
    %p61 = por %p59, %p60
    %p62 = scmp.ne.s32.totalorder %s50, %s51
    %p63 = scmp.eq.s32.totalorder %s20, 1
    %p64 = por %p62, %p63
    %p66 = scmp.ne.s32.totalorder %s51, %s65
    %p67 = scmp.eq.s32.totalorder %s20, 0
    %p68 = por %p66, %p67
    %s70 = sadd.s32 %s69, 1
    %p73 = scmp.eq.s32.totalorder %s14, 1
    %p74 = scmp.ne.s32.totalorder %s69, %s71
    %p75 = scmp.eq.s32.totalorder %s14, 0
    %p76 = por %p74, %p75
    %p77 = scmp.ne.s32.totalorder %s69, %s71
    %p78 = scmp.eq.s32.totalorder %s19, 1
    %p79 = por %p77, %p78
    %p80 = scmp.ne.s32.totalorder %s71, %s72
    %p81 = scmp.eq.s32.totalorder %s19, 0
    %p82 = por %p80, %p81
    %p83 = scmp.ne.s32.totalorder %s71, %s72
    %p84 = scmp.eq.s32.totalorder %s20, 1
    %p85 = por %p83, %p84
    %p87 = scmp.ne.s32.totalorder %s72, %s86
    %p88 = scmp.eq.s32.totalorder %s20, 0
    %p89 = por %p87, %p88
    %s91 = sadd.s32 %s90, 1
    %p94 = scmp.eq.s32.totalorder %s14, 1
    %p95 = scmp.ne.s32.totalorder %s90, %s92
    %p96 = scmp.eq.s32.totalorder %s14, 0
    %p97 = por %p95, %p96
    %p98 = scmp.ne.s32.totalorder %s90, %s92
    %p99 = scmp.eq.s32.totalorder %s19, 1
    %p100 = por %p98, %p99
    %p101 = scmp.ne.s32.totalorder %s92, %s93
    %p102 = scmp.eq.s32.totalorder %s19, 0
    %p103 = por %p101, %p102
    %p104 = scmp.ne.s32.totalorder %s92, %s93
    %p105 = scmp.eq.s32.totalorder %s20, 1
    %p106 = por %p104, %p105
    %p108 = scmp.ne.s32.totalorder %s93, %s107
    %p109 = scmp.eq.s32.totalorder %s20, 0
    %p110 = por %p108, %p109
    %s112 = sadd.s32 %s111, 1
    %p115 = scmp.eq.s32.totalorder %s14, 1
    %p116 = scmp.ne.s32.totalorder %s111, %s113
    %p117 = scmp.eq.s32.totalorder %s14, 0
    %p118 = por %p116, %p117
    %p119 = scmp.ne.s32.totalorder %s111, %s113
    %p120 = scmp.eq.s32.totalorder %s19, 1
    %p121 = por %p119, %p120
    %p122 = scmp.ne.s32.totalorder %s113, %s114
    %p123 = scmp.eq.s32.totalorder %s19, 0
    %p124 = por %p122, %p123
    %p125 = scmp.ne.s32.totalorder %s113, %s114
    %p126 = scmp.eq.s32.totalorder %s20, 1
    %p127 = por %p125, %p126
    %p129 = scmp.ne.s32.totalorder %s114, %s128
    %p130 = scmp.eq.s32.totalorder %s20, 0
    %p131 = por %p129, %p130
    %s133 = sadd.s32 %s132, 1
    %p136 = scmp.eq.s32.totalorder %s14, 1
    %p137 = scmp.ne.s32.totalorder %s132, %s134
    %p138 = scmp.eq.s32.totalorder %s14, 0
    %p139 = por %p137, %p138
    %p140 = scmp.ne.s32.totalorder %s132, %s134
    %p141 = scmp.eq.s32.totalorder %s19, 1
    %p142 = por %p140, %p141
    %p143 = scmp.ne.s32.totalorder %s134, %s135
    %p144 = scmp.eq.s32.totalorder %s19, 0
    %p145 = por %p143, %p144
    %p146 = scmp.ne.s32.totalorder %s134, %s135
    %p147 = scmp.eq.s32.totalorder %s20, 1
    %p148 = por %p146, %p147
    %p150 = scmp.ne.s32.totalorder %s135, %s149
    %p151 = scmp.eq.s32.totalorder %s20, 0
    %p152 = por %p150, %p151
    %s153 = ssub.s32 %s14, %s21
    %p154 = scmp.eq.s32.totalorder %s153, 0
    %s156 = sadd.s32 %s155, 1
    %s157 = scalar_select %p154, %s155, %s156
    %p160 = pneg %p154
    %p161 = scmp.eq.s32.totalorder %s14, 1
    %p162 = por %p160, %p161
    %p163 = scmp.ne.s32.totalorder %s155, %s158
    %p164 = scmp.eq.s32.totalorder %s14, 0
    %p165 = por %p163, %p164
    %p166 = scmp.ne.s32.totalorder %s155, %s158
    %p167 = scmp.eq.s32.totalorder %s19, 1
    %p168 = por %p166, %p167
    %p169 = scmp.ne.s32.totalorder %s158, %s159
    %p170 = scmp.eq.s32.totalorder %s19, 0
    %p171 = por %p169, %p170
    %p172 = scmp.ne.s32.totalorder %s158, %s159
    %p173 = scmp.eq.s32.totalorder %s20, 1
    %p174 = por %p172, %p173
    %p176 = scmp.ne.s32.totalorder %s159, %s175
    %p177 = scmp.eq.s32.totalorder %s20, 0
    %p178 = por %p176, %p177
    %s179 = ssub.s32 %s14, %s21
    %p180 = scmp.eq.s32.totalorder %s179, 0
    %s182 = sadd.s32 %s181, 1
    %s183 = scalar_select %p180, %s181, %s182
    %p186 = pneg %p180
    %p187 = scmp.eq.s32.totalorder %s14, 1
    %p188 = por %p186, %p187
    %p189 = scmp.ne.s32.totalorder %s181, %s184
    %p190 = scmp.eq.s32.totalorder %s14, 0
    %p191 = por %p189, %p190
    %p192 = scmp.ne.s32.totalorder %s181, %s184
    %p193 = scmp.eq.s32.totalorder %s19, 1
    %p194 = por %p192, %p193
    %p195 = scmp.ne.s32.totalorder %s184, %s185
    %p196 = scmp.eq.s32.totalorder %s19, 0
    %p197 = por %p195, %p196
    %p198 = scmp.ne.s32.totalorder %s184, %s185
    %p199 = scmp.eq.s32.totalorder %s20, 1
    %p200 = por %p198, %p199
    %p202 = scmp.ne.s32.totalorder %s185, %s201
    %p203 = scmp.eq.s32.totalorder %s20, 0
    %p204 = por %p202, %p203
    %p205 = scmp.le.s32.totalorder 1, %s14
    %p206 = scmp.lt.s32.totalorder %s14, 3
    %p207 = pnand %p205, %p206
    %p208 = pneg %p207
    // Predicated region
    $region9: #{tasnet_forward.3} parent=5 // pred_check
      _
    $region10: #{tasnet_forward.3} parent=5 // pred_check_branch
      %210 = sbr.rel (%p207) target = $region12
    $region11: #{tasnet_forward.3} parent=5 // pred_region
      %s211 = ssub.s32 %s14, 1
      // Predicated region
      $region13: #{tasnet_forward.3} parent=11 // pred_check
        %p212 = pneg %p61
      $region14: #{tasnet_forward.3} parent=11 // pred_check_branch
        %214 = sbr.rel (%p212) target = $region16
      $region15: #{tasnet_forward.3} parent=11 // pred_region
        _
      $region16: #{tasnet_forward.3} parent=11 // pred_fallthru
        _
      // Predicated region
      $region17: #{tasnet_forward.3} parent=11 // pred_check
        %p215 = pneg %p82
      $region18: #{tasnet_forward.3} parent=11 // pred_check_branch
        %217 = sbr.rel (%p215) target = $region20
      $region19: #{tasnet_forward.3} parent=11 // pred_region
        _
      $region20: #{tasnet_forward.3} parent=11 // pred_fallthru
        _
      // Predicated region
      $region21: #{tasnet_forward.3} parent=11 // pred_check
        %p218 = pneg %p103
      $region22: #{tasnet_forward.3} parent=11 // pred_check_branch
        %220 = sbr.rel (%p218) target = $region24
      $region23: #{tasnet_forward.3} parent=11 // pred_region
        _
      $region24: #{tasnet_forward.3} parent=11 // pred_fallthru
        _
      // Predicated region
      $region25: #{tasnet_forward.3} parent=11 // pred_check
        %p221 = pneg %p124
      $region26: #{tasnet_forward.3} parent=11 // pred_check_branch
        %223 = sbr.rel (%p221) target = $region28
      $region27: #{tasnet_forward.3} parent=11 // pred_region
        _
      $region28: #{tasnet_forward.3} parent=11 // pred_fallthru
        _
      // Predicated region
      $region29: #{tasnet_forward.3} parent=11 // pred_check
        %p224 = pneg %p145
      $region30: #{tasnet_forward.3} parent=11 // pred_check_branch
        %226 = sbr.rel (%p224) target = $region32
      $region31: #{tasnet_forward.3} parent=11 // pred_region
        _
      $region32: #{tasnet_forward.3} parent=11 // pred_fallthru
        _
    $region12: #{tasnet_forward.3} parent=5 // pred_fallthru
      _
    %p227 = scmp.lt.s32.totalorder %s14, 2
    // Predicated region
    $region33: #{tasnet_forward.3} parent=5 // pred_check
      %p228 = pneg %p227
    $region34: #{tasnet_forward.3} parent=5 // pred_check_branch
      %230 = sbr.rel (%p228) target = $region36
    $region35: #{tasnet_forward.3} parent=5 // pred_region
      // Predicated region
      $region37: #{tasnet_forward.3} parent=35 // pred_check
        %p231 = pneg %p34
      $region38: #{tasnet_forward.3} parent=35 // pred_check_branch
        %233 = sbr.rel (%p231) target = $region40
      $region39: #{tasnet_forward.3} parent=35 // pred_region
        %p234 = scmp.lt.s32.totalorder %s14, 1
        %s235 = scalar_select %p234, %s14, 1
        %s236 = smul.addr %s235, 2
        %s237 = smul.addr %s236, 8
        %s238 = scalar_lea.vmem %s0, %s237
      $region40: #{tasnet_forward.3} parent=35 // pred_fallthru
        _
    $region36: #{tasnet_forward.3} parent=5 // pred_fallthru
      _
    %p239 = scmp.le.s32.totalorder 1, %s14
    %p240 = scmp.lt.s32.totalorder %s14, 3
    %p241 = pnand %p239, %p240
    %p242 = pneg %p241
    // Predicated region
    $region41: #{tasnet_forward.3} parent=5 // pred_check
      _
    $region42: #{tasnet_forward.3} parent=5 // pred_check_branch
      %244 = sbr.rel (%p241) target = $region44
    $region43: #{tasnet_forward.3} parent=5 // pred_region
      %s245 = ssub.s32 %s14, 1
      %p246 = scmp.lt.s32.totalorder %s19, 1
      %s247 = scalar_select %p246, %s19, 1
      %s248 = smul.addr %s247, 2
      %s249 = smul.addr %s248, 8
      %s250 = scalar_lea.vmem %s0, %s249
      %p251 = pneg %p40
      %p252 = pneg %p37
      %p253 = pneg %p61
      %p254 = pneg %p58
      %p255 = pneg %p82
      %p256 = pneg %p79
      %p257 = pneg %p103
      %p258 = pneg %p100
      %p259 = pneg %p124
      %p260 = pneg %p121
      %p261 = pneg %p145
      %p262 = pneg %p142
      %p263 = pneg %p171
      %p264 = pneg %p168
      %p265 = scmp.lt.s32.totalorder %s19, 1
      %s266 = scalar_select %p265, %s19, 1
      %s267 = smul.addr %s266, 2
      %s268 = smul.addr %s267, 8
      %s269 = scalar_lea.vmem %s6, %s268
      %p270 = pneg %p197
      %p271 = pneg %p194
      %p272 = scmp.lt.s32.totalorder %s19, 1
      %s273 = scalar_select %p272, %s19, 1
      %s274 = smul.addr %s273, 2
      %s275 = smul.addr %s274, 8
      %s276 = scalar_lea.vmem %s7, %s275
      %p277 = scmp.lt.s32.totalorder %s19, 1
      %s278 = scalar_select %p277, %s19, 1
      %s279 = smul.addr %s278, 2
      %s280 = smul.addr %s279, 8
      %s281 = scalar_lea.vmem %s0, %s280
      %p282 = scmp.lt.s32.totalorder %s19, 1
      %s283 = scalar_select %p282, %s19, 1
      %s284 = smul.addr %s283, 2
      %s285 = smul.addr %s284, 8
      %s286 = scalar_lea.vmem %s6, %s285
      %p287 = scmp.lt.s32.totalorder %s19, 1
      %s288 = scalar_select %p287, %s19, 1
      %s289 = smul.addr %s288, 2
      %s290 = smul.addr %s289, 8
      %s291 = scalar_lea.vmem %s7, %s290
      %v293 = vld [vmem:[%s281] sm:$0xff]
      %v294 = vld [vmem:[%s281 + $0x8] sm:$0x3f]
      %v295 = vpack.c.bf16 %v294, %v293
      %v296 = vld [vmem:[%s1] sm:$0xf]
      %v297 = vld [vmem:[%s1 + $0x4] sm:$0xf]
      %v298 = vld [vmem:[%s1 + $0x8] sm:$0xf]
      %v299 = vld [vmem:[%s1 + $0xc] sm:$0xf]
      %v304 = vunpack.c.l.b16 %v296
      %v305 = vunpack.c.l.b16 %v297
      %v306 = vunpack.c.l.b16 %v298
      %v307 = vunpack.c.l.b16 %v299
      %v308 = vpack.c.b16 %v305, %v304
      %v309 = vpack.c.b16 %v307, %v306
      %vm312 = vcmask 261120
      %v314 = vsel %vm312, %v295, 0
      %316 = vmatprep.subr.bf16.mxu0 0
      %317 = vmatpush1.bf16.msra.mxu0 %v308
      %318 = vmatprep.subr.bf16.mxu0 0
      %319 = vmatpush1.bf16.msra.mxu0 %v309
      %320 = vmatprep.subr.bf16.mxu0 0
      %321 = vmatpush1.bf16.msra.mxu0 0
      %322 = vmatprep.subr.bf16.mxu0 0
      %323 = vmatpush1.bf16.msra.mxu0 0
      %324 = vmatprep.subr.bf16.mxu0 0
      %325 = vmatpush1.bf16.msra.mxu0 0
      %326 = vmatprep.subr.bf16.mxu0 0
      %327 = vmatpush1.bf16.msra.mxu0 0
      %328 = vmatprep.subr.bf16.mxu0 0
      %329 = vmatpush1.bf16.msra.mxu0 0
      %330 = vmatprep.subr.bf16.mxu0 0
      %331 = vmatpush1.bf16.msra.mxu0 0
      %332 = vmatprep.subr.bf16.mxu0 0
      %333 = vmatpush1.bf16.msra.mxu0 0
      %334 = vmatprep.subr.bf16.mxu0 0
      %335 = vmatpush1.bf16.msra.mxu0 0
      %336 = vmatprep.subr.bf16.mxu0 0
      %337 = vmatpush1.bf16.msra.mxu0 0
      %338 = vmatprep.subr.bf16.mxu0 0
      %339 = vmatpush1.bf16.msra.mxu0 0
      %340 = vmatprep.subr.bf16.mxu0 0
      %341 = vmatpush1.bf16.msra.mxu0 0
      %342 = vmatprep.subr.bf16.mxu0 0
      %343 = vmatpush1.bf16.msra.mxu0 0
      %344 = vmatprep.subr.bf16.mxu0 0
      %345 = vmatpush1.bf16.msra.mxu0 0
      %346 = vmatprep.subr.bf16.mxu0 0
      %347 = vmatpush1.bf16.msra.mxu0 0
      %348 = vmatprep.mubr.bf16.mxu0 0
      %349 = vmatmul.mubr.bf16.gmra.mrb[0].mxu0 %v314
      %v350 = vpop.f32.mrb[0].mxu0
      %v351 = vadd.f32 0.0, %v350
      %v352 = vpop.f32.mrb[0].mxu0
      %v353 = vpop.f32.mrb[0].mxu0
      %v354 = vadd.f32 0.0, %v353
      %v355 = vpop.f32.mrb[0].mxu0
      %356 = vdwg.mxu0
      %357 = vst [vmem:[%s286] sm:$0xff] %v351
      %358 = vst [vmem:[%s286 + $0x8] sm:$0x3f] %v354
      %vm359 = vcmask 1045504
      %v360 = vsel %vm359, %v354, 0.0
      %v361 = vadd.f32 %v351, %v360
      %362 = vadd.xlane.f32.xlu0 %v361
      %v363 = vpop.xlane.xlu0 %362
      %v364 = vrot.slane %v363, 4
      %v365 = vadd.f32 %v363, %v364
      %v366 = vrot.slane %v365, 2
      %v367 = vadd.f32 %v365, %v366
      %v368 = vrot.slane %v367, 1
      %v369 = vadd.f32 %v367, %v368
      %s370 = vtos %v369
      %v371 = vrcp.pop 448.0
      %s372 = vtos %v371
      %s373 = smul.f32 %s370, %s372
      %v374 = vmul.f32 %v351, %v351
      %v375 = vmul.f32 %v354, %v354
      %v376 = vsel %vm359, %v375, 0.0
      %v377 = vadd.f32 %v374, %v376
      %378 = vadd.xlane.f32.xlu0 %v377
      %v379 = vpop.xlane.xlu0 %378
      %v380 = vrot.slane %v379, 4
      %v381 = vadd.f32 %v379, %v380
      %v382 = vrot.slane %v381, 2
      %v383 = vadd.f32 %v381, %v382
      %v384 = vrot.slane %v383, 1
      %v385 = vadd.f32 %v383, %v384
      %s386 = vtos %v385
      %v387 = vrcp.pop 448.0
      %s388 = vtos %v387
      %s389 = smul.f32 %s386, %s388
      %s390 = smul.f32 %s373, %s373
      %s391 = ssub.f32 %s389, %s390
      %s392 = smax.f32 %s391, 0.0
      %v393 = vstv %s373
      %v394 = vsub.f32 %v351, %v393
      %v395 = vsub.f32 %v354, %v393
      %s396 = sadd.f32 %s392, 1e-08
      %v397 = vstv %s396
      %v398 = vrsqrt.pop %v397
      %s399 = vtos %v398
      %v400 = vstv %s399
      %v401 = vmul.f32 %v394, %v400
      %v402 = vmul.f32 %v395, %v400
      %v403 = vld [vmem:[%s2] sm:$0x1]
      %v405 = vlaneseq
      %v406 = vshrl.u32 %v405, 7
      %v407 = vsub.s32 0, %v406
      %v408 = vrot.slane %v403, %v407
      %v410 = vmul.f32 %v401, %v408
      %v411 = vmul.f32 %v402, %v408
      %v412 = vld [vmem:[%s3] sm:$0x1]
      %v414 = vlaneseq
      %v415 = vshrl.u32 %v414, 7
      %v416 = vsub.s32 0, %v415
      %v417 = vrot.slane %v412, %v416
      %v419 = vadd.f32 %v410, %v417
      %v420 = vadd.f32 %v411, %v417
      %v421 = vpack.c.bf16 %v420, %v419
      %v422 = vld [vmem:[%s4] sm:$0xf]
      %v423 = vld [vmem:[%s4 + $0x4] sm:$0xf]
      %v424 = vld [vmem:[%s4 + $0x8] sm:$0xf]
      %v425 = vld [vmem:[%s4 + $0xc] sm:$0xf]
      %v426 = vld [vmem:[%s4 + $0x10] sm:$0xf]
      %v427 = vld [vmem:[%s4 + $0x14] sm:$0xf]
      %v428 = vld [vmem:[%s4 + $0x18] sm:$0xf]
      %v429 = vld [vmem:[%s4 + $0x1c] sm:$0xf]
      %v430 = vld [vmem:[%s4 + $0x20] sm:$0xf]
      %v431 = vld [vmem:[%s4 + $0x24] sm:$0xf]
      %v432 = vld [vmem:[%s4 + $0x28] sm:$0xf]
      %v433 = vld [vmem:[%s4 + $0x2c] sm:$0xf]
      %v434 = vld [vmem:[%s4 + $0x30] sm:$0xf]
      %v435 = vld [vmem:[%s4 + $0x34] sm:$0xf]
      %v436 = vld [vmem:[%s4 + $0x38] sm:$0xf]
      %v437 = vld [vmem:[%s4 + $0x3c] sm:$0xf]
      %v438 = vld [vmem:[%s5] sm:$0x1]
      %v440 = vlaneseq
      %v441 = vshrl.u32 %v440, 7
      %v442 = vsub.s32 0, %v441
      %v443 = vrot.slane %v438, %v442
      %v461 = vunpack.c.l.b16 %v422
      %v462 = vunpack.c.l.b16 %v423
      %v463 = vunpack.c.l.b16 %v424
      %v464 = vunpack.c.l.b16 %v425
      %v465 = vunpack.c.l.b16 %v426
      %v466 = vunpack.c.l.b16 %v427
      %v467 = vunpack.c.l.b16 %v428
      %v468 = vunpack.c.l.b16 %v429
      %v469 = vunpack.c.l.b16 %v430
      %v470 = vunpack.c.l.b16 %v431
      %v471 = vunpack.c.l.b16 %v432
      %v472 = vunpack.c.l.b16 %v433
      %v473 = vunpack.c.l.b16 %v434
      %v474 = vunpack.c.l.b16 %v435
      %v475 = vunpack.c.l.b16 %v436
      %v476 = vunpack.c.l.b16 %v437
      %v477 = vpack.c.b16 %v462, %v461
      %v478 = vpack.c.b16 %v464, %v463
      %v479 = vpack.c.b16 %v466, %v465
      %v480 = vpack.c.b16 %v468, %v467
      %v481 = vpack.c.b16 %v470, %v469
      %v482 = vpack.c.b16 %v472, %v471
      %v483 = vpack.c.b16 %v474, %v473
      %v484 = vpack.c.b16 %v476, %v475
      %493 = vmatprep.subr.bf16.mxu0 0
      %494 = vmatpush1.bf16.msra.mxu0 %v477
      %495 = vmatprep.subr.bf16.mxu0 0
      %496 = vmatpush1.bf16.msra.mxu0 %v478
      %497 = vmatprep.subr.bf16.mxu0 0
      %498 = vmatpush1.bf16.msra.mxu0 %v479
      %499 = vmatprep.subr.bf16.mxu0 0
      %500 = vmatpush1.bf16.msra.mxu0 %v480
      %501 = vmatprep.subr.bf16.mxu0 0
      %502 = vmatpush1.bf16.msra.mxu0 %v481
      %503 = vmatprep.subr.bf16.mxu0 0
      %504 = vmatpush1.bf16.msra.mxu0 %v482
      %505 = vmatprep.subr.bf16.mxu0 0
      %506 = vmatpush1.bf16.msra.mxu0 %v483
      %507 = vmatprep.subr.bf16.mxu0 0
      %508 = vmatpush1.bf16.msra.mxu0 %v484
      %509 = vmatprep.subr.bf16.mxu0 0
      %510 = vmatpush1.bf16.msra.mxu0 0
      %511 = vmatprep.subr.bf16.mxu0 0
      %512 = vmatpush1.bf16.msra.mxu0 0
      %513 = vmatprep.subr.bf16.mxu0 0
      %514 = vmatpush1.bf16.msra.mxu0 0
      %515 = vmatprep.subr.bf16.mxu0 0
      %516 = vmatpush1.bf16.msra.mxu0 0
      %517 = vmatprep.subr.bf16.mxu0 0
      %518 = vmatpush1.bf16.msra.mxu0 0
      %519 = vmatprep.subr.bf16.mxu0 0
      %520 = vmatpush1.bf16.msra.mxu0 0
      %521 = vmatprep.subr.bf16.mxu0 0
      %522 = vmatpush1.bf16.msra.mxu0 0
      %523 = vmatprep.subr.bf16.mxu0 0
      %524 = vmatpush1.bf16.msra.mxu0 0
      %525 = vmatprep.mubr.bf16.mxu0 0
      %526 = vmatmul.mubr.bf16.gmra.mrb[0].mxu0 %v421
      %v527 = vpop.f32.mrb[0].mxu0
      %v528 = vadd.f32 %v443, %v527
      %v529 = vpop.f32.mrb[0].mxu0
      %v530 = vpop.f32.mrb[0].mxu0
      %v531 = vadd.f32 %v443, %v530
      %v532 = vpop.f32.mrb[0].mxu0
      %533 = vdwg.mxu0
      %534 = vst [vmem:[%s291] sm:$0xff] %v528
      %535 = vst [vmem:[%s291 + $0x8] sm:$0x3f] %v531
      %p536 = scmp.lt.s32.totalorder %s19, 1
      %s537 = scalar_select %p536, %s19, 1
      %s538 = smul.addr %s537, 2
      %s539 = smul.addr %s538, 8
      %s540 = scalar_lea.vmem %s6, %s539
      %p541 = scmp.lt.s32.totalorder %s19, 1
      %s542 = scalar_select %p541, %s19, 1
      %s543 = smul.addr %s542, 2
      %s544 = smul.addr %s543, 8
      %s545 = scalar_lea.vmem %s7, %s544
      // Predicated region
      $region45: #{tasnet_forward.3} parent=43 // pred_check
        %p546 = pneg %p168
      $region46: #{tasnet_forward.3} parent=43 // pred_check_branch
        %548 = sbr.rel (%p546) target = $region48
      $region47: #{tasnet_forward.3} parent=43 // pred_region
        _
      $region48: #{tasnet_forward.3} parent=43 // pred_fallthru
        _
      // Predicated region
      $region49: #{tasnet_forward.3} parent=43 // pred_check
        %p549 = pneg %p194
      $region50: #{tasnet_forward.3} parent=43 // pred_check_branch
        %551 = sbr.rel (%p549) target = $region52
      $region51: #{tasnet_forward.3} parent=43 // pred_region
        _
      $region52: #{tasnet_forward.3} parent=43 // pred_fallthru
        _
    $region44: #{tasnet_forward.3} parent=5 // pred_fallthru
      _
    %p552 = scmp.le.s32.totalorder 2, %s14
    // Predicated region
    $region53: #{tasnet_forward.3} parent=5 // pred_check
      %p553 = pneg %p552
    $region54: #{tasnet_forward.3} parent=5 // pred_check_branch
      %555 = sbr.rel (%p553) target = $region56
    $region55: #{tasnet_forward.3} parent=5 // pred_region
      %s556 = ssub.s32 %s14, 2
      // Predicated region
      $region57: #{tasnet_forward.3} parent=55 // pred_check
        %p557 = pneg %p174
      $region58: #{tasnet_forward.3} parent=55 // pred_check_branch
        %559 = sbr.rel (%p557) target = $region60
      $region59: #{tasnet_forward.3} parent=55 // pred_region
        %p560 = scmp.lt.s32.totalorder %s20, 1
        %s561 = scalar_select %p560, %s20, 1
        %s562 = smul.addr %s561, 2
        %s563 = smul.addr %s562, 8
        %s564 = scalar_lea.vmem %s6, %s563
      $region60: #{tasnet_forward.3} parent=55 // pred_fallthru
        _
      // Predicated region
      $region61: #{tasnet_forward.3} parent=55 // pred_check
        %p565 = pneg %p200
      $region62: #{tasnet_forward.3} parent=55 // pred_check_branch
        %567 = sbr.rel (%p565) target = $region64
      $region63: #{tasnet_forward.3} parent=55 // pred_region
        %p568 = scmp.lt.s32.totalorder %s20, 1
        %s569 = scalar_select %p568, %s20, 1
        %s570 = smul.addr %s569, 2
        %s571 = smul.addr %s570, 8
        %s572 = scalar_lea.vmem %s7, %s571
      $region64: #{tasnet_forward.3} parent=55 // pred_fallthru
        _
    $region56: #{tasnet_forward.3} parent=5 // pred_fallthru
      _
  $region6: #{tasnet_forward.3} parent=0 // loop_footer
    %s18 = sadd.s32 1, %s14
  $region7: #{tasnet_forward.3} parent=0 // loop_footer_branch
    %13 = sbr.rel target = $region3
  $region8: #{tasnet_forward.3} parent=0 // loop_exit
    _

// kernel: tasnet_forward.4
$region0: #{tasnet_forward.4}
  #allocation0 [shape = 'u32[]', space=smem, size = 0x4, offset = 0x4, fixed_abs, tag = 'smem constant byte address 0x4 - core index']
  #allocation1 [shape = 'u32[144,128]{1,0:T(1,128)}', space=vmem, size = 0x12000, scoped, tag = 'internal scratch']
  #allocation2 [shape = 'f32[14,128]{1,0:T(8,128)}', space=vmem, size = 0x2000, scoped, tag = 'scratch operand']
  #allocation3 [shape = 'f32[24,128]{1,0:T(8,128)}', space=vmem, size = 0x3000, scoped, tag = 'scratch operand']
  #allocation4 [shape = 's32[1]{0}', space=sflag, size = 0x4, scoped, tag = 'scoped memory for tasnet_forward.4']
  #allocation5 [shape = 'u8[512]{0}', space=smem, size = 0x200, scoped, tag = 'prefetched SMEM operand 0']
  %s0 = inlined_call_operand.vmem [shape: s32[4], index: 0, kind: input, shape index: {}]
  %s1 = inlined_call_operand.vmem [shape: f32[2,14,128], index: 1, kind: input, shape index: {}]
  %s2 = inlined_call_operand.vmem [shape: bf16[4,128,128], index: 2, kind: input, shape index: {}]
  %s3 = inlined_call_operand.vmem [shape: f32[4,1,128], index: 3, kind: input, shape index: {}]
  %s4 = inlined_call_operand.vmem [shape: f32[4,1,128], index: 4, kind: input, shape index: {}]
  %s5 = inlined_call_operand.vmem [shape: f32[4,1,128], index: 5, kind: input, shape index: {}]
  %s6 = inlined_call_operand.vmem [shape: f32[4,3,128], index: 6, kind: input, shape index: {}]
  %s7 = inlined_call_operand.vmem [shape: f32[4,1,128], index: 7, kind: input, shape index: {}]
  %s8 = inlined_call_operand.vmem [shape: f32[4,1,128], index: 8, kind: input, shape index: {}]
  %s9 = inlined_call_operand.vmem [shape: f32[4,1,128], index: 9, kind: input, shape index: {}]
  %s10 = inlined_call_operand.hbm [shape: bf16[4,128,256], index: 10, kind: input, shape index: {}]
  %s11 = inlined_call_operand.vmem [shape: f32[4,1,256], index: 11, kind: input, shape index: {}]
  %s12 = inlined_call_operand.vmem [shape: f32[2,14,128], index: 12, kind: output, shape index: {}]
  %s13 = sld [smem:[#allocation0]]
  $region85: #{tasnet_forward.4} parent=0
    _
  %s15 = ssub.s32 1, %s13
  %s16 = scalar_select 0, %s15, %s13
  %s17 = sshll.u32 %s0, 4
  %s18 = int_to_ptr.vmem [resolvable:$true] %s17
  %20 = dma.vmem_to_smem %s18, 16, [#allocation5], [#allocation4]
  %21 = dma.done [#allocation4], 16
  %22 = sfence
  $region1: #{tasnet_forward.4} parent=0
    #allocation6 [shape = 'u8[131072]{0}', space=vmem, size = 0x20000, scoped, tag = 'input window, operand 10']
    #allocation7 [shape = 's32[2]{0}', space=sflag, size = 0x8, scoped, tag = 'scoped memory for tasnet_forward.4']
    %23 = vsyncpa [#allocation7], 0
    %s24 = scalar_lea.sflag [#allocation7], 1
    %25 = vsyncpa %s24, 0
    loop: start=0, step=1, limit=10
    $region2: #{tasnet_forward.4} parent=1 // loop_pre_header
      _
    $region3: #{tasnet_forward.4} parent=1 // loop_header
      %s27 = sphi 0, %s31
      %p28 = scmp.ge.s32.totalorder %s27, 10
      %s34 = sphi 0, %s46
      %s35 = sphi 0, %s42
      %s36 = sphi 0, %s34
      %s37 = sphi 0, %s35
      %s38 = sphi 0, %s36
      %s39 = sphi 0, %s37
      %s49 = sphi 0, %s51
      %s52 = sphi 0, %s49
      %s53 = sphi 0, %s52
      %s69 = sphi 0, %s53
      %s75 = sphi 0, %s77
      %s78 = sphi 0, %s75
      %s79 = sphi 0, %s78
      %s95 = sphi 0, %s79
      %s101 = sphi 0, %s103
      %s104 = sphi 0, %s101
      %s105 = sphi 0, %s104
      %s121 = sphi 0, %s105
      %s127 = sphi 0, %s129
      %s130 = sphi 0, %s127
      %s131 = sphi 0, %s130
      %s147 = sphi 0, %s131
      %s153 = sphi 0, %s155
      %s156 = sphi 0, %s153
      %s157 = sphi 0, %s156
      %s173 = sphi 0, %s157
      %s179 = sphi 0, %s181
      %s182 = sphi 0, %s179
      %s183 = sphi 0, %s182
      %s199 = sphi 0, %s183
      %s205 = sphi 0, %s207
      %s208 = sphi 0, %s205
      %s209 = sphi 0, %s208
      %s225 = sphi 0, %s209
      %s231 = sphi 0, %s233
      %s234 = sphi 0, %s231
      %s235 = sphi 0, %s234
      %s251 = sphi 0, %s235
      %s257 = sphi 0, %s259
      %s260 = sphi 0, %s257
      %s261 = sphi 0, %s260
      %s277 = sphi 0, %s261
      %s283 = sphi 0, %s285
      %s286 = sphi 0, %s283
      %s287 = sphi 0, %s286
      %s303 = sphi 0, %s287
      %s309 = sphi 0, %s311
      %s312 = sphi 0, %s309
      %s313 = sphi 0, %s312
      %s329 = sphi 0, %s313
      %s335 = sphi 0, %s337
      %s338 = sphi 0, %s335
      %s339 = sphi 0, %s338
      %s355 = sphi 0, %s339
    $region4: #{tasnet_forward.4} parent=1 // loop_header_branch
      %30 = sbr.rel (%p28) target = $region8
    $region5: #{tasnet_forward.4} parent=1 // loop_body
      %s32 = ssub.s32 %s27, 1
      %s33 = ssub.s32 %s27, 2
      %s40 = sadd.s32 1, %s35
      %p41 = scmp.ge.s32.totalorder %s40, 4
      %s42 = scalar_select %p41, 0, %s40
      %s43 = sadd.s32 1, %s34
      %s44 = scalar_select %p41, %s43, %s34
      %p45 = scmp.ge.s32.totalorder %s44, 2
      %s46 = scalar_select %p45, 0, %s44
      %s47 = ssub.s32 %s34, %s46
      %p48 = scmp.eq.s32.totalorder %s47, 0
      %s50 = sadd.s32 %s49, 1
      %s51 = scalar_select %p48, %s49, %s50
      %p54 = pneg %p48
      %p55 = scmp.eq.s32.totalorder %s27, 7
      %p56 = por %p54, %p55
      %p57 = scmp.ne.s32.totalorder %s49, %s52
      %p58 = scmp.eq.s32.totalorder %s27, 0
      %p59 = por %p57, %p58
      %p60 = scmp.ne.s32.totalorder %s49, %s52
      %p61 = scmp.eq.s32.totalorder %s32, 7
      %p62 = por %p60, %p61
      %p63 = scmp.ne.s32.totalorder %s52, %s53
      %p64 = scmp.eq.s32.totalorder %s32, 0
      %p65 = por %p63, %p64
      %p66 = scmp.ne.s32.totalorder %s52, %s53
      %p67 = scmp.eq.s32.totalorder %s33, 7
      %p68 = por %p66, %p67
      %p70 = scmp.ne.s32.totalorder %s53, %s69
      %p71 = scmp.eq.s32.totalorder %s33, 0
      %p72 = por %p70, %p71
      %s73 = ssub.s32 %s35, %s42
      %p74 = scmp.eq.s32.totalorder %s73, 0
      %s76 = sadd.s32 %s75, 1
      %s77 = scalar_select %p74, %s75, %s76
      %p80 = pneg %p74
      %p81 = scmp.eq.s32.totalorder %s27, 7
      %p82 = por %p80, %p81
      %p83 = scmp.ne.s32.totalorder %s75, %s78
      %p84 = scmp.eq.s32.totalorder %s27, 0
      %p85 = por %p83, %p84
      %p86 = scmp.ne.s32.totalorder %s75, %s78
      %p87 = scmp.eq.s32.totalorder %s32, 7
      %p88 = por %p86, %p87
      %p89 = scmp.ne.s32.totalorder %s78, %s79
      %p90 = scmp.eq.s32.totalorder %s32, 0
      %p91 = por %p89, %p90
      %p92 = scmp.ne.s32.totalorder %s78, %s79
      %p93 = scmp.eq.s32.totalorder %s33, 7
      %p94 = por %p92, %p93
      %p96 = scmp.ne.s32.totalorder %s79, %s95
      %p97 = scmp.eq.s32.totalorder %s33, 0
      %p98 = por %p96, %p97
      %s99 = ssub.s32 %s35, %s42
      %p100 = scmp.eq.s32.totalorder %s99, 0
      %s102 = sadd.s32 %s101, 1
      %s103 = scalar_select %p100, %s101, %s102
      %p106 = pneg %p100
      %p107 = scmp.eq.s32.totalorder %s27, 7
      %p108 = por %p106, %p107
      %p109 = scmp.ne.s32.totalorder %s101, %s104
      %p110 = scmp.eq.s32.totalorder %s27, 0
      %p111 = por %p109, %p110
      %p112 = scmp.ne.s32.totalorder %s101, %s104
      %p113 = scmp.eq.s32.totalorder %s32, 7
      %p114 = por %p112, %p113
      %p115 = scmp.ne.s32.totalorder %s104, %s105
      %p116 = scmp.eq.s32.totalorder %s32, 0
      %p117 = por %p115, %p116
      %p118 = scmp.ne.s32.totalorder %s104, %s105
      %p119 = scmp.eq.s32.totalorder %s33, 7
      %p120 = por %p118, %p119
      %p122 = scmp.ne.s32.totalorder %s105, %s121
      %p123 = scmp.eq.s32.totalorder %s33, 0
      %p124 = por %p122, %p123
      %s125 = ssub.s32 %s35, %s42
      %p126 = scmp.eq.s32.totalorder %s125, 0
      %s128 = sadd.s32 %s127, 1
      %s129 = scalar_select %p126, %s127, %s128
      %p132 = pneg %p126
      %p133 = scmp.eq.s32.totalorder %s27, 7
      %p134 = por %p132, %p133
      %p135 = scmp.ne.s32.totalorder %s127, %s130
      %p136 = scmp.eq.s32.totalorder %s27, 0
      %p137 = por %p135, %p136
      %p138 = scmp.ne.s32.totalorder %s127, %s130
      %p139 = scmp.eq.s32.totalorder %s32, 7
      %p140 = por %p138, %p139
      %p141 = scmp.ne.s32.totalorder %s130, %s131
      %p142 = scmp.eq.s32.totalorder %s32, 0
      %p143 = por %p141, %p142
      %p144 = scmp.ne.s32.totalorder %s130, %s131
      %p145 = scmp.eq.s32.totalorder %s33, 7
      %p146 = por %p144, %p145
      %p148 = scmp.ne.s32.totalorder %s131, %s147
      %p149 = scmp.eq.s32.totalorder %s33, 0
      %p150 = por %p148, %p149
      %s151 = ssub.s32 %s35, %s42
      %p152 = scmp.eq.s32.totalorder %s151, 0
      %s154 = sadd.s32 %s153, 1
      %s155 = scalar_select %p152, %s153, %s154
      %p158 = pneg %p152
      %p159 = scmp.eq.s32.totalorder %s27, 7
      %p160 = por %p158, %p159
      %p161 = scmp.ne.s32.totalorder %s153, %s156
      %p162 = scmp.eq.s32.totalorder %s27, 0
      %p163 = por %p161, %p162
      %p164 = scmp.ne.s32.totalorder %s153, %s156
      %p165 = scmp.eq.s32.totalorder %s32, 7
      %p166 = por %p164, %p165
      %p167 = scmp.ne.s32.totalorder %s156, %s157
      %p168 = scmp.eq.s32.totalorder %s32, 0
      %p169 = por %p167, %p168
      %p170 = scmp.ne.s32.totalorder %s156, %s157
      %p171 = scmp.eq.s32.totalorder %s33, 7
      %p172 = por %p170, %p171
      %p174 = scmp.ne.s32.totalorder %s157, %s173
      %p175 = scmp.eq.s32.totalorder %s33, 0
      %p176 = por %p174, %p175
      %s177 = ssub.s32 %s35, %s42
      %p178 = scmp.eq.s32.totalorder %s177, 0
      %s180 = sadd.s32 %s179, 1
      %s181 = scalar_select %p178, %s179, %s180
      %p184 = pneg %p178
      %p185 = scmp.eq.s32.totalorder %s27, 7
      %p186 = por %p184, %p185
      %p187 = scmp.ne.s32.totalorder %s179, %s182
      %p188 = scmp.eq.s32.totalorder %s27, 0
      %p189 = por %p187, %p188
      %p190 = scmp.ne.s32.totalorder %s179, %s182
      %p191 = scmp.eq.s32.totalorder %s32, 7
      %p192 = por %p190, %p191
      %p193 = scmp.ne.s32.totalorder %s182, %s183
      %p194 = scmp.eq.s32.totalorder %s32, 0
      %p195 = por %p193, %p194
      %p196 = scmp.ne.s32.totalorder %s182, %s183
      %p197 = scmp.eq.s32.totalorder %s33, 7
      %p198 = por %p196, %p197
      %p200 = scmp.ne.s32.totalorder %s183, %s199
      %p201 = scmp.eq.s32.totalorder %s33, 0
      %p202 = por %p200, %p201
      %s203 = ssub.s32 %s35, %s42
      %p204 = scmp.eq.s32.totalorder %s203, 0
      %s206 = sadd.s32 %s205, 1
      %s207 = scalar_select %p204, %s205, %s206
      %p210 = pneg %p204
      %p211 = scmp.eq.s32.totalorder %s27, 7
      %p212 = por %p210, %p211
      %p213 = scmp.ne.s32.totalorder %s205, %s208
      %p214 = scmp.eq.s32.totalorder %s27, 0
      %p215 = por %p213, %p214
      %p216 = scmp.ne.s32.totalorder %s205, %s208
      %p217 = scmp.eq.s32.totalorder %s32, 7
      %p218 = por %p216, %p217
      %p219 = scmp.ne.s32.totalorder %s208, %s209
      %p220 = scmp.eq.s32.totalorder %s32, 0
      %p221 = por %p219, %p220
      %p222 = scmp.ne.s32.totalorder %s208, %s209
      %p223 = scmp.eq.s32.totalorder %s33, 7
      %p224 = por %p222, %p223
      %p226 = scmp.ne.s32.totalorder %s209, %s225
      %p227 = scmp.eq.s32.totalorder %s33, 0
      %p228 = por %p226, %p227
      %s229 = ssub.s32 %s35, %s42
      %p230 = scmp.eq.s32.totalorder %s229, 0
      %s232 = sadd.s32 %s231, 1
      %s233 = scalar_select %p230, %s231, %s232
      %p236 = pneg %p230
      %p237 = scmp.eq.s32.totalorder %s27, 7
      %p238 = por %p236, %p237
      %p239 = scmp.ne.s32.totalorder %s231, %s234
      %p240 = scmp.eq.s32.totalorder %s27, 0
      %p241 = por %p239, %p240
      %p242 = scmp.ne.s32.totalorder %s231, %s234
      %p243 = scmp.eq.s32.totalorder %s32, 7
      %p244 = por %p242, %p243
      %p245 = scmp.ne.s32.totalorder %s234, %s235
      %p246 = scmp.eq.s32.totalorder %s32, 0
      %p247 = por %p245, %p246
      %p248 = scmp.ne.s32.totalorder %s234, %s235
      %p249 = scmp.eq.s32.totalorder %s33, 7
      %p250 = por %p248, %p249
      %p252 = scmp.ne.s32.totalorder %s235, %s251
      %p253 = scmp.eq.s32.totalorder %s33, 0
      %p254 = por %p252, %p253
      %s255 = ssub.s32 %s35, %s42
      %p256 = scmp.eq.s32.totalorder %s255, 0
      %s258 = sadd.s32 %s257, 1
      %s259 = scalar_select %p256, %s257, %s258
      %p262 = pneg %p256
      %p263 = scmp.eq.s32.totalorder %s27, 7
      %p264 = por %p262, %p263
      %p265 = scmp.ne.s32.totalorder %s257, %s260
      %p266 = scmp.eq.s32.totalorder %s27, 0
      %p267 = por %p265, %p266
      %p268 = scmp.ne.s32.totalorder %s257, %s260
      %p269 = scmp.eq.s32.totalorder %s32, 7
      %p270 = por %p268, %p269
      %p271 = scmp.ne.s32.totalorder %s260, %s261
      %p272 = scmp.eq.s32.totalorder %s32, 0
      %p273 = por %p271, %p272
      %p274 = scmp.ne.s32.totalorder %s260, %s261
      %p275 = scmp.eq.s32.totalorder %s33, 7
      %p276 = por %p274, %p275
      %p278 = scmp.ne.s32.totalorder %s261, %s277
      %p279 = scmp.eq.s32.totalorder %s33, 0
      %p280 = por %p278, %p279
      %s281 = ssub.s32 %s35, %s42
      %p282 = scmp.eq.s32.totalorder %s281, 0
      %s284 = sadd.s32 %s283, 1
      %s285 = scalar_select %p282, %s283, %s284
      %p288 = pneg %p282
      %p289 = scmp.eq.s32.totalorder %s27, 7
      %p290 = por %p288, %p289
      %p291 = scmp.ne.s32.totalorder %s283, %s286
      %p292 = scmp.eq.s32.totalorder %s27, 0
      %p293 = por %p291, %p292
      %p294 = scmp.ne.s32.totalorder %s283, %s286
      %p295 = scmp.eq.s32.totalorder %s32, 7
      %p296 = por %p294, %p295
      %p297 = scmp.ne.s32.totalorder %s286, %s287
      %p298 = scmp.eq.s32.totalorder %s32, 0
      %p299 = por %p297, %p298
      %p300 = scmp.ne.s32.totalorder %s286, %s287
      %p301 = scmp.eq.s32.totalorder %s33, 7
      %p302 = por %p300, %p301
      %p304 = scmp.ne.s32.totalorder %s287, %s303
      %p305 = scmp.eq.s32.totalorder %s33, 0
      %p306 = por %p304, %p305
      %s307 = ssub.s32 %s35, %s42
      %p308 = scmp.eq.s32.totalorder %s307, 0
      %s310 = sadd.s32 %s309, 1
      %s311 = scalar_select %p308, %s309, %s310
      %p314 = pneg %p308
      %p315 = scmp.eq.s32.totalorder %s27, 7
      %p316 = por %p314, %p315
      %p317 = scmp.ne.s32.totalorder %s309, %s312
      %p318 = scmp.eq.s32.totalorder %s27, 0
      %p319 = por %p317, %p318
      %p320 = scmp.ne.s32.totalorder %s309, %s312
      %p321 = scmp.eq.s32.totalorder %s32, 7
      %p322 = por %p320, %p321
      %p323 = scmp.ne.s32.totalorder %s312, %s313
      %p324 = scmp.eq.s32.totalorder %s32, 0
      %p325 = por %p323, %p324
      %p326 = scmp.ne.s32.totalorder %s312, %s313
      %p327 = scmp.eq.s32.totalorder %s33, 7
      %p328 = por %p326, %p327
      %p330 = scmp.ne.s32.totalorder %s313, %s329
      %p331 = scmp.eq.s32.totalorder %s33, 0
      %p332 = por %p330, %p331
      %s333 = ssub.s32 %s34, %s46
      %p334 = scmp.eq.s32.totalorder %s333, 0
      %s336 = sadd.s32 %s335, 1
      %s337 = scalar_select %p334, %s335, %s336
      %p340 = pneg %p334
      %p341 = scmp.eq.s32.totalorder %s27, 7
      %p342 = por %p340, %p341
      %p343 = scmp.ne.s32.totalorder %s335, %s338
      %p344 = scmp.eq.s32.totalorder %s27, 0
      %p345 = por %p343, %p344
      %p346 = scmp.ne.s32.totalorder %s335, %s338
      %p347 = scmp.eq.s32.totalorder %s32, 7
      %p348 = por %p346, %p347
      %p349 = scmp.ne.s32.totalorder %s338, %s339
      %p350 = scmp.eq.s32.totalorder %s32, 0
      %p351 = por %p349, %p350
      %p352 = scmp.ne.s32.totalorder %s338, %s339
      %p353 = scmp.eq.s32.totalorder %s33, 7
      %p354 = por %p352, %p353
      %p356 = scmp.ne.s32.totalorder %s339, %s355
      %p357 = scmp.eq.s32.totalorder %s33, 0
      %p358 = por %p356, %p357
      %p359 = scmp.le.s32.totalorder 1, %s27
      %p360 = scmp.lt.s32.totalorder %s27, 9
      %p361 = pnand %p359, %p360
      %p362 = pneg %p361
      // Predicated region
      $region9: #{tasnet_forward.4} parent=5 // pred_check
        _
      $region10: #{tasnet_forward.4} parent=5 // pred_check_branch
        %364 = sbr.rel (%p361) target = $region12
      $region11: #{tasnet_forward.4} parent=5 // pred_region
        %s365 = ssub.s32 %s27, 1
      $region12: #{tasnet_forward.4} parent=5 // pred_fallthru
        _
      %p366 = scmp.lt.s32.totalorder %s27, 8
      // Predicated region
      $region13: #{tasnet_forward.4} parent=5 // pred_check
        %p367 = pneg %p366
      $region14: #{tasnet_forward.4} parent=5 // pred_check_branch
        %369 = sbr.rel (%p367) target = $region16
      $region15: #{tasnet_forward.4} parent=5 // pred_region
        // Predicated region
        $region17: #{tasnet_forward.4} parent=15 // pred_check
          %p370 = pneg %p59
        $region18: #{tasnet_forward.4} parent=15 // pred_check_branch
          %372 = sbr.rel (%p370) target = $region20
        $region19: #{tasnet_forward.4} parent=15 // pred_region
          %p373 = scmp.lt.s32.totalorder %s34, 1
          %s374 = scalar_select %p373, %s34, 1
          %s375 = smul.addr %s374, 2
          %s376 = smul.addr %s375, 8
          %s377 = scalar_lea.vmem %s1, %s376
        $region20: #{tasnet_forward.4} parent=15 // pred_fallthru
          _
        // Predicated region
        $region21: #{tasnet_forward.4} parent=15 // pred_check
          %p378 = pneg %p85
        $region22: #{tasnet_forward.4} parent=15 // pred_check_branch
          %380 = sbr.rel (%p378) target = $region24
        $region23: #{tasnet_forward.4} parent=15 // pred_region
          %p381 = scmp.lt.s32.totalorder %s35, 3
          %s382 = scalar_select %p381, %s35, 3
          %s383 = smul.addr %s382, 16
          %s384 = smul.addr %s383, 4
          %s385 = scalar_lea.vmem %s2, %s384
        $region24: #{tasnet_forward.4} parent=15 // pred_fallthru
          _
        // Predicated region
        $region25: #{tasnet_forward.4} parent=15 // pred_check
          %p386 = pneg %p111
        $region26: #{tasnet_forward.4} parent=15 // pred_check_branch
          %388 = sbr.rel (%p386) target = $region28
        $region27: #{tasnet_forward.4} parent=15 // pred_region
          %p389 = scmp.lt.s32.totalorder %s35, 3
          %s390 = scalar_select %p389, %s35, 3
          %s391 = scalar_lea.vmem %s3, %s390
        $region28: #{tasnet_forward.4} parent=15 // pred_fallthru
          _
        // Predicated region
        $region29: #{tasnet_forward.4} parent=15 // pred_check
          %p392 = pneg %p137
        $region30: #{tasnet_forward.4} parent=15 // pred_check_branch
          %394 = sbr.rel (%p392) target = $region32
        $region31: #{tasnet_forward.4} parent=15 // pred_region
          %p395 = scmp.lt.s32.totalorder %s35, 3
          %s396 = scalar_select %p395, %s35, 3
          %s397 = scalar_lea.vmem %s4, %s396
        $region32: #{tasnet_forward.4} parent=15 // pred_fallthru
          _
        // Predicated region
        $region33: #{tasnet_forward.4} parent=15 // pred_check
          %p398 = pneg %p163
        $region34: #{tasnet_forward.4} parent=15 // pred_check_branch
          %400 = sbr.rel (%p398) target = $region36
        $region35: #{tasnet_forward.4} parent=15 // pred_region
          %p401 = scmp.lt.s32.totalorder %s35, 3
          %s402 = scalar_select %p401, %s35, 3
          %s403 = scalar_lea.vmem %s5, %s402
        $region36: #{tasnet_forward.4} parent=15 // pred_fallthru
          _
        // Predicated region
        $region37: #{tasnet_forward.4} parent=15 // pred_check
          %p404 = pneg %p189
        $region38: #{tasnet_forward.4} parent=15 // pred_check_branch
          %406 = sbr.rel (%p404) target = $region40
        $region39: #{tasnet_forward.4} parent=15 // pred_region
          %p407 = scmp.lt.s32.totalorder %s35, 3
          %s408 = scalar_select %p407, %s35, 3
          %s409 = smul.addr %s408, 4
          %s410 = scalar_lea.vmem %s6, %s409
        $region40: #{tasnet_forward.4} parent=15 // pred_fallthru
          _
        // Predicated region
        $region41: #{tasnet_forward.4} parent=15 // pred_check
          %p411 = pneg %p215
        $region42: #{tasnet_forward.4} parent=15 // pred_check_branch
          %413 = sbr.rel (%p411) target = $region44
        $region43: #{tasnet_forward.4} parent=15 // pred_region
          %p414 = scmp.lt.s32.totalorder %s35, 3
          %s415 = scalar_select %p414, %s35, 3
          %s416 = scalar_lea.vmem %s7, %s415
        $region44: #{tasnet_forward.4} parent=15 // pred_fallthru
          _
        // Predicated region
        $region45: #{tasnet_forward.4} parent=15 // pred_check
          %p417 = pneg %p241
        $region46: #{tasnet_forward.4} parent=15 // pred_check_branch
          %419 = sbr.rel (%p417) target = $region48
        $region47: #{tasnet_forward.4} parent=15 // pred_region
          %p420 = scmp.lt.s32.totalorder %s35, 3
          %s421 = scalar_select %p420, %s35, 3
          %s422 = scalar_lea.vmem %s8, %s421
        $region48: #{tasnet_forward.4} parent=15 // pred_fallthru
          _
        // Predicated region
        $region49: #{tasnet_forward.4} parent=15 // pred_check
          %p423 = pneg %p267
        $region50: #{tasnet_forward.4} parent=15 // pred_check_branch
          %425 = sbr.rel (%p423) target = $region52
        $region51: #{tasnet_forward.4} parent=15 // pred_region
          %p426 = scmp.lt.s32.totalorder %s35, 3
          %s427 = scalar_select %p426, %s35, 3
          %s428 = scalar_lea.vmem %s9, %s427
        $region52: #{tasnet_forward.4} parent=15 // pred_fallthru
          _
        // Predicated region
        $region53: #{tasnet_forward.4} parent=15 // pred_check
          %p429 = pneg %p293
        $region54: #{tasnet_forward.4} parent=15 // pred_check_branch
          %431 = sbr.rel (%p429) target = $region56
        $region55: #{tasnet_forward.4} parent=15 // pred_region
          %s432 = sand.u32 %s283, 1
          %s433 = scalar_lea.sflag [#allocation7], %s432
          %s434 = sand.u32 %s283, 1
          %s435 = smul.addr %s434, 128
          %s436 = scalar_lea.vmem [#allocation6], %s435
          %s438 = ssub.s32 2048, 2048
          %439 = vsyncadd %s433, %s438
          %s440 = smul.addr %s35, 32
          %s441 = smul.addr %s440, 64
          %s442 = scalar_lea.hbm %s10, %s441
          %s443 = sshll.u32 %s436, 4
          %s444 = int_to_ptr.vmem [resolvable:$true] %s443
          %449 = dma.hbm_to_vmem [thread:$0]  %s442, 2048, %s444, %s433, 128, 128, 8
        $region56: #{tasnet_forward.4} parent=15 // pred_fallthru
          _
        // Predicated region
        $region57: #{tasnet_forward.4} parent=15 // pred_check
          %p450 = pneg %p319
        $region58: #{tasnet_forward.4} parent=15 // pred_check_branch
          %452 = sbr.rel (%p450) target = $region60
        $region59: #{tasnet_forward.4} parent=15 // pred_region
          %p453 = scmp.lt.s32.totalorder %s35, 3
          %s454 = scalar_select %p453, %s35, 3
          %s455 = smul.addr %s454, 2
          %s456 = scalar_lea.vmem %s11, %s455
        $region60: #{tasnet_forward.4} parent=15 // pred_fallthru
          _
      $region16: #{tasnet_forward.4} parent=5 // pred_fallthru
        _
      %p457 = scmp.le.s32.totalorder 1, %s27
      %p458 = scmp.lt.s32.totalorder %s27, 9
      %p459 = pnand %p457, %p458
      %p460 = pneg %p459
      // Predicated region
      $region61: #{tasnet_forward.4} parent=5 // pred_check
        _
      $region62: #{tasnet_forward.4} parent=5 // pred_check_branch
        %462 = sbr.rel (%p459) target = $region64
      $region63: #{tasnet_forward.4} parent=5 // pred_region
        %s463 = ssub.s32 %s27, 1
        %s464 = sand.u32 %s286, 1
        %s465 = scalar_lea.sflag [#allocation7], %s464
        %s466 = sand.u32 %s286, 1
        %s467 = smul.addr %s466, 128
        %s468 = scalar_lea.vmem [#allocation6], %s467
        // Predicated region
        $region65: #{tasnet_forward.4} parent=63 // pred_check
          %p469 = pneg %p299
        $region66: #{tasnet_forward.4} parent=63 // pred_check_branch
          %471 = sbr.rel (%p469) target = $region68
        $region67: #{tasnet_forward.4} parent=63 // pred_region
          %472 = dma.done %s465, 2048
        $region68: #{tasnet_forward.4} parent=63 // pred_fallthru
          _
        %p473 = scmp.lt.s32.totalorder %s36, 1
        %s474 = scalar_select %p473, %s36, 1
        %s475 = smul.addr %s474, 2
        %s476 = smul.addr %s475, 8
        %s477 = scalar_lea.vmem %s1, %s476
        %p478 = pneg %p65
        %p479 = pneg %p62
        %p480 = scmp.lt.s32.totalorder %s37, 3
        %s481 = scalar_select %p480, %s37, 3
        %s482 = smul.addr %s481, 16
        %s483 = smul.addr %s482, 4
        %s484 = scalar_lea.vmem %s2, %s483
        %p485 = pneg %p91
        %p486 = pneg %p88
        %p487 = scmp.lt.s32.totalorder %s37, 3
        %s488 = scalar_select %p487, %s37, 3
        %s489 = scalar_lea.vmem %s3, %s488
        %p490 = pneg %p117
        %p491 = pneg %p114
        %p492 = scmp.lt.s32.totalorder %s37, 3
        %s493 = scalar_select %p492, %s37, 3
        %s494 = scalar_lea.vmem %s4, %s493
        %p495 = pneg %p143
        %p496 = pneg %p140
        %p497 = scmp.lt.s32.totalorder %s37, 3
        %s498 = scalar_select %p497, %s37, 3
        %s499 = scalar_lea.vmem %s5, %s498
        %p500 = pneg %p169
        %p501 = pneg %p166
        %p502 = scmp.lt.s32.totalorder %s37, 3
        %s503 = scalar_select %p502, %s37, 3
        %s504 = smul.addr %s503, 4
        %s505 = scalar_lea.vmem %s6, %s504
        %p506 = pneg %p195
        %p507 = pneg %p192
        %p508 = scmp.lt.s32.totalorder %s37, 3
        %s509 = scalar_select %p508, %s37, 3
        %s510 = scalar_lea.vmem %s7, %s509
        %p511 = pneg %p221
        %p512 = pneg %p218
        %p513 = scmp.lt.s32.totalorder %s37, 3
        %s514 = scalar_select %p513, %s37, 3
        %s515 = scalar_lea.vmem %s8, %s514
        %p516 = pneg %p247
        %p517 = pneg %p244
        %p518 = scmp.lt.s32.totalorder %s37, 3
        %s519 = scalar_select %p518, %s37, 3
        %s520 = scalar_lea.vmem %s9, %s519
        %p521 = pneg %p273
        %p522 = pneg %p270
        %s523 = sand.u32 %s286, 1
        %s524 = scalar_lea.sflag [#allocation7], %s523
        %s525 = sand.u32 %s286, 1
        %s526 = smul.addr %s525, 128
        %s527 = scalar_lea.vmem [#allocation6], %s526
        %p528 = pneg %p299
        %p529 = pneg %p296
        %p530 = scmp.lt.s32.totalorder %s37, 3
        %s531 = scalar_select %p530, %s37, 3
        %s532 = smul.addr %s531, 2
        %s533 = scalar_lea.vmem %s11, %s532
        %p534 = pneg %p325
        %p535 = pneg %p322
        %p536 = pneg %p351
        %p537 = pneg %p348
        %p538 = scmp.lt.s32.totalorder %s36, 1
        %s539 = scalar_select %p538, %s36, 1
        %s540 = smul.addr %s539, 2
        %s541 = smul.addr %s540, 8
        %s542 = scalar_lea.vmem %s12, %s541
        %p543 = scmp.lt.s32.totalorder %s36, 1
        %s544 = scalar_select %p543, %s36, 1
        %s545 = smul.addr %s544, 2
        %s546 = smul.addr %s545, 8
        %s547 = scalar_lea.vmem %s1, %s546
        %p548 = scmp.lt.s32.totalorder %s37, 3
        %s549 = scalar_select %p548, %s37, 3
        %s550 = smul.addr %s549, 16
        %s551 = smul.addr %s550, 4
        %s552 = scalar_lea.vmem %s2, %s551
        %p553 = scmp.lt.s32.totalorder %s37, 3
        %s554 = scalar_select %p553, %s37, 3
        %s555 = scalar_lea.vmem %s3, %s554
        %p556 = scmp.lt.s32.totalorder %s37, 3
        %s557 = scalar_select %p556, %s37, 3
        %s558 = scalar_lea.vmem %s4, %s557
        %p559 = scmp.lt.s32.totalorder %s37, 3
        %s560 = scalar_select %p559, %s37, 3
        %s561 = scalar_lea.vmem %s5, %s560
        %p562 = scmp.lt.s32.totalorder %s37, 3
        %s563 = scalar_select %p562, %s37, 3
        %s564 = smul.addr %s563, 4
        %s565 = scalar_lea.vmem %s6, %s564
        %p566 = scmp.lt.s32.totalorder %s37, 3
        %s567 = scalar_select %p566, %s37, 3
        %s568 = scalar_lea.vmem %s7, %s567
        %p569 = scmp.lt.s32.totalorder %s37, 3
        %s570 = scalar_select %p569, %s37, 3
        %s571 = scalar_lea.vmem %s8, %s570
        %p572 = scmp.lt.s32.totalorder %s37, 3
        %s573 = scalar_select %p572, %s37, 3
        %s574 = scalar_lea.vmem %s9, %s573
        %p575 = scmp.lt.s32.totalorder %s37, 3
        %s576 = scalar_select %p575, %s37, 3
        %s577 = smul.addr %s576, 2
        %s578 = scalar_lea.vmem %s11, %s577
        %p579 = scmp.lt.s32.totalorder %s36, 1
        %s580 = scalar_select %p579, %s36, 1
        %s581 = smul.addr %s580, 2
        %s582 = smul.addr %s581, 8
        %s583 = scalar_lea.vmem %s12, %s582
        %p585 = scmp.eq.s32.totalorder %s37, 0
        // Predicated region
        $region69: #{tasnet_forward.4} parent=63 // pred_check
          %p586 = pneg %p585
        $region70: #{tasnet_forward.4} parent=63 // pred_check_branch
          %588 = sbr.rel (%p586) target = $region72
        $region71: #{tasnet_forward.4} parent=63 // pred_region
          %v589 = vld [vmem:[%s547] sm:$0xff]
          %v590 = vld [vmem:[%s547 + $0x8] sm:$0x3f]
          %591 = vst [vmem:[#allocation2] sm:$0xff] %v589
          %592 = vst [vmem:[#allocation2 + $0x8] sm:$0x3f] %v590
          %593 = vst [vmem:[%s583] sm:$0xff] 0.0
          %594 = vst [vmem:[%s583 + $0x8] sm:$0x3f] 0.0
          %595 = vst [vmem:[#allocation3] sm:$0xff] 0.0
          %596 = vst [vmem:[#allocation3 + $0x8] sm:$0xff] 0.0
          %597 = vst [vmem:[#allocation3 + $0x10] sm:$0xff] 0.0
        $region72: #{tasnet_forward.4} parent=63 // pred_fallthru
          _
        %v598 = vld [vmem:[#allocation2] sm:$0xff]
        %v599 = vld [vmem:[#allocation2 + $0x8] sm:$0x3f]
        %s600 = sld [smem:[#allocation5 + %s37]]
        %v601 = vpack.c.bf16 %v599, %v598
        %v602 = vld [vmem:[%s552] sm:$0xf]
        %v603 = vld [vmem:[%s552 + $0x4] sm:$0xf]
        %v604 = vld [vmem:[%s552 + $0x8] sm:$0xf]
        %v605 = vld [vmem:[%s552 + $0xc] sm:$0xf]
        %v606 = vld [vmem:[%s552 + $0x10] sm:$0xf]
        %v607 = vld [vmem:[%s552 + $0x14] sm:$0xf]
        %v608 = vld [vmem:[%s552 + $0x18] sm:$0xf]
        %v609 = vld [vmem:[%s552 + $0x1c] sm:$0xf]
        %v610 = vld [vmem:[%s552 + $0x20] sm:$0xf]
        %v611 = vld [vmem:[%s552 + $0x24] sm:$0xf]
        %v612 = vld [vmem:[%s552 + $0x28] sm:$0xf]
        %v613 = vld [vmem:[%s552 + $0x2c] sm:$0xf]
        %v614 = vld [vmem:[%s552 + $0x30] sm:$0xf]
        %v615 = vld [vmem:[%s552 + $0x34] sm:$0xf]
        %v616 = vld [vmem:[%s552 + $0x38] sm:$0xf]
        %v617 = vld [vmem:[%s552 + $0x3c] sm:$0xf]
        %v618 = vld [vmem:[%s555] sm:$0x1]
        %v620 = vlaneseq
        %v621 = vshrl.u32 %v620, 7
        %v622 = vsub.s32 0, %v621
        %v623 = vrot.slane %v618, %v622
        %v641 = vunpack.c.l.b16 %v602
        %v642 = vunpack.c.l.b16 %v603
        %v643 = vunpack.c.l.b16 %v604
        %v644 = vunpack.c.l.b16 %v605
        %v645 = vunpack.c.l.b16 %v606
        %v646 = vunpack.c.l.b16 %v607
        %v647 = vunpack.c.l.b16 %v608
        %v648 = vunpack.c.l.b16 %v609
        %v649 = vunpack.c.l.b16 %v610
        %v650 = vunpack.c.l.b16 %v611
        %v651 = vunpack.c.l.b16 %v612
        %v652 = vunpack.c.l.b16 %v613
        %v653 = vunpack.c.l.b16 %v614
        %v654 = vunpack.c.l.b16 %v615
        %v655 = vunpack.c.l.b16 %v616
        %v656 = vunpack.c.l.b16 %v617
        %v657 = vpack.c.b16 %v642, %v641
        %v658 = vpack.c.b16 %v644, %v643
        %v659 = vpack.c.b16 %v646, %v645
        %v660 = vpack.c.b16 %v648, %v647
        %v661 = vpack.c.b16 %v650, %v649
        %v662 = vpack.c.b16 %v652, %v651
        %v663 = vpack.c.b16 %v654, %v653
        %v664 = vpack.c.b16 %v656, %v655
        %673 = vmatprep.subr.bf16.mxu0 0
        %674 = vmatpush1.bf16.msra.mxu0 %v657
        %675 = vmatprep.subr.bf16.mxu0 0
        %676 = vmatpush1.bf16.msra.mxu0 %v658
        %677 = vmatprep.subr.bf16.mxu0 0
        %678 = vmatpush1.bf16.msra.mxu0 %v659
        %679 = vmatprep.subr.bf16.mxu0 0
        %680 = vmatpush1.bf16.msra.mxu0 %v660
        %681 = vmatprep.subr.bf16.mxu0 0
        %682 = vmatpush1.bf16.msra.mxu0 %v661
        %683 = vmatprep.subr.bf16.mxu0 0
        %684 = vmatpush1.bf16.msra.mxu0 %v662
        %685 = vmatprep.subr.bf16.mxu0 0
        %686 = vmatpush1.bf16.msra.mxu0 %v663
        %687 = vmatprep.subr.bf16.mxu0 0
        %688 = vmatpush1.bf16.msra.mxu0 %v664
        %689 = vmatprep.subr.bf16.mxu0 0
        %690 = vmatpush1.bf16.msra.mxu0 0
        %691 = vmatprep.subr.bf16.mxu0 0
        %692 = vmatpush1.bf16.msra.mxu0 0
        %693 = vmatprep.subr.bf16.mxu0 0
        %694 = vmatpush1.bf16.msra.mxu0 0
        %695 = vmatprep.subr.bf16.mxu0 0
        %696 = vmatpush1.bf16.msra.mxu0 0
        %697 = vmatprep.subr.bf16.mxu0 0
        %698 = vmatpush1.bf16.msra.mxu0 0
        %699 = vmatprep.subr.bf16.mxu0 0
        %700 = vmatpush1.bf16.msra.mxu0 0
        %701 = vmatprep.subr.bf16.mxu0 0
        %702 = vmatpush1.bf16.msra.mxu0 0
        %703 = vmatprep.subr.bf16.mxu0 0
        %704 = vmatpush1.bf16.msra.mxu0 0
        %705 = vmatprep.mubr.bf16.mxu0 0
        %706 = vmatmul.mubr.bf16.gmra.mrb[0].mxu0 %v601
        %v707 = vpop.f32.mrb[0].mxu0
        %v708 = vadd.f32 %v623, %v707
        %v709 = vpop.f32.mrb[0].mxu0
        %v710 = vpop.f32.mrb[0].mxu0
        %v711 = vadd.f32 %v623, %v710
        %v712 = vpop.f32.mrb[0].mxu0
        %713 = vdwg.mxu0
        %vm714 = vcmp.ge.f32.partialorder %v708, 0.0
        %vm715 = vcmp.ge.f32.partialorder %v711, 0.0
        %v716 = vmul.f32 %v708, 0.25
        %v717 = vmul.f32 %v711, 0.25
        %v718 = vsel %vm714, %v708, %v716
        %v719 = vsel %vm715, %v711, %v717
        %vm720 = vcmask 1045504
        %v721 = vsel %vm720, %v719, 0.0
        %v722 = vadd.f32 %v718, %v721
        %723 = vadd.xlane.f32.xlu0 %v722
        %v724 = vpop.xlane.xlu0 %723
        %v725 = vrot.slane %v724, 4
        %v726 = vadd.f32 %v724, %v725
        %v727 = vrot.slane %v726, 2
        %v728 = vadd.f32 %v726, %v727
        %v729 = vrot.slane %v728, 1
        %v730 = vadd.f32 %v728, %v729
        %s731 = vtos %v730
        %v732 = vrcp.pop 896.0
        %s733 = vtos %v732
        %s734 = smul.f32 %s731, %s733
        %v735 = vmul.f32 %v718, %v718
        %v736 = vmul.f32 %v719, %v719
        %v737 = vsel %vm720, %v736, 0.0
        %v738 = vadd.f32 %v735, %v737
        %739 = vadd.xlane.f32.xlu0 %v738
        %v740 = vpop.xlane.xlu0 %739
        %v741 = vrot.slane %v740, 4
        %v742 = vadd.f32 %v740, %v741
        %v743 = vrot.slane %v742, 2
        %v744 = vadd.f32 %v742, %v743
        %v745 = vrot.slane %v744, 1
        %v746 = vadd.f32 %v744, %v745
        %s747 = vtos %v746
        %v748 = vrcp.pop 896.0
        %s749 = vtos %v748
        %s750 = smul.f32 %s747, %s749
        %s751 = smul.f32 %s734, %s734
        %s752 = ssub.f32 %s750, %s751
        %s753 = smax.f32 %s752, 0.0
        %v754 = vstv %s734
        %v755 = vsub.f32 %v718, %v754
        %v756 = vsub.f32 %v719, %v754
        %s757 = sadd.f32 %s753, 1e-08
        %v758 = vstv %s757
        %v759 = vrsqrt.pop %v758
        %s760 = vtos %v759
        %v761 = vstv %s760
        %v762 = vmul.f32 %v755, %v761
        %v763 = vmul.f32 %v756, %v761
        %v764 = vld [vmem:[%s558] sm:$0x1]
        %v766 = vlaneseq
        %v767 = vshrl.u32 %v766, 7
        %v768 = vsub.s32 0, %v767
        %v769 = vrot.slane %v764, %v768
        %v771 = vmul.f32 %v762, %v769
        %v772 = vmul.f32 %v763, %v769
        %v773 = vld [vmem:[%s561] sm:$0x1]
        %v775 = vlaneseq
        %v776 = vshrl.u32 %v775, 7
        %v777 = vsub.s32 0, %v776
        %v778 = vrot.slane %v773, %v777
        %v780 = vadd.f32 %v771, %v778
        %v781 = vadd.f32 %v772, %v778
        %782 = vst [vmem:[#allocation3 + $0x8] sm:$0xff] %v780
        %783 = vst [vmem:[#allocation3 + $0x10] sm:$0x3f] %v781
        %v784 = vld [vmem:[%s565] sm:$0x7]
        %s785 = ssub.s32 8, %s600
        %s786 = scalar_lea.vmem [#allocation3], %s785
        %v787 = vld [vmem:[%s786] sm:$0xff]
        %v788 = vld [vmem:[%s786 + $0x8] sm:$0x3f]
        %s789 = sadd.s32 %s600, 8
        %s790 = scalar_lea.vmem [#allocation3], %s789
        %v791 = vld [vmem:[%s790] sm:$0xff]
        %v792 = vld [vmem:[%s790 + $0x8] sm:$0x3f]
        %v793 = vlaneseq
        %v794 = vshrl.u32 %v793, 7
        %v795 = vsub.s32 0, %v794
        %v796 = vrot.slane %v784, %v795
        %v797 = vmul.f32 %v787, %v796
        %v798 = vmul.f32 %v788, %v796
        %v799 = vlaneseq
        %v800 = vshrl.u32 %v799, 7
        %v801 = vsub.s32 1, %v800
        %v802 = vrot.slane %v784, %v801
        %v803 = vmul.f32 %v780, %v802
        %v804 = vmul.f32 %v781, %v802
        %v805 = vadd.f32 %v797, %v803
        %v806 = vadd.f32 %v798, %v804
        %v807 = vlaneseq
        %v808 = vshrl.u32 %v807, 7
        %v809 = vsub.s32 2, %v808
        %v810 = vrot.slane %v784, %v809
        %v811 = vmul.f32 %v791, %v810
        %v812 = vmul.f32 %v792, %v810
        %v813 = vadd.f32 %v805, %v811
        %v814 = vadd.f32 %v806, %v812
        %v815 = vld [vmem:[%s568] sm:$0x1]
        %v817 = vlaneseq
        %v818 = vshrl.u32 %v817, 7
        %v819 = vsub.s32 0, %v818
        %v820 = vrot.slane %v815, %v819
        %v822 = vadd.f32 %v813, %v820
        %v823 = vadd.f32 %v814, %v820
        %vm824 = vcmp.ge.f32.partialorder %v822, 0.0
        %vm825 = vcmp.ge.f32.partialorder %v823, 0.0
        %v826 = vmul.f32 %v822, 0.25
        %v827 = vmul.f32 %v823, 0.25
        %v828 = vsel %vm824, %v822, %v826
        %v829 = vsel %vm825, %v823, %v827
        %v830 = vsel %vm720, %v829, 0.0
        %v831 = vadd.f32 %v828, %v830
        %832 = vadd.xlane.f32.xlu0 %v831
        %v833 = vpop.xlane.xlu0 %832
        %v834 = vrot.slane %v833, 4
        %v835 = vadd.f32 %v833, %v834
        %v836 = vrot.slane %v835, 2
        %v837 = vadd.f32 %v835, %v836
        %v838 = vrot.slane %v837, 1
        %v839 = vadd.f32 %v837, %v838
        %s840 = vtos %v839
        %v841 = vrcp.pop 896.0
        %s842 = vtos %v841
        %s843 = smul.f32 %s840, %s842
        %v844 = vmul.f32 %v828, %v828
        %v845 = vmul.f32 %v829, %v829
        %v846 = vsel %vm720, %v845, 0.0
        %v847 = vadd.f32 %v844, %v846
        %848 = vadd.xlane.f32.xlu0 %v847
        %v849 = vpop.xlane.xlu0 %848
        %v850 = vrot.slane %v849, 4
        %v851 = vadd.f32 %v849, %v850
        %v852 = vrot.slane %v851, 2
        %v853 = vadd.f32 %v851, %v852
        %v854 = vrot.slane %v853, 1
        %v855 = vadd.f32 %v853, %v854
        %s856 = vtos %v855
        %v857 = vrcp.pop 896.0
        %s858 = vtos %v857
        %s859 = smul.f32 %s856, %s858
        %s860 = smul.f32 %s843, %s843
        %s861 = ssub.f32 %s859, %s860
        %s862 = smax.f32 %s861, 0.0
        %v863 = vstv %s843
        %v864 = vsub.f32 %v828, %v863
        %v865 = vsub.f32 %v829, %v863
        %s866 = sadd.f32 %s862, 1e-08
        %v867 = vstv %s866
        %v868 = vrsqrt.pop %v867
        %s869 = vtos %v868
        %v870 = vstv %s869
        %v871 = vmul.f32 %v864, %v870
        %v872 = vmul.f32 %v865, %v870
        %v873 = vld [vmem:[%s571] sm:$0x1]
        %v875 = vlaneseq
        %v876 = vshrl.u32 %v875, 7
        %v877 = vsub.s32 0, %v876
        %v878 = vrot.slane %v873, %v877
        %v880 = vmul.f32 %v871, %v878
        %v881 = vmul.f32 %v872, %v878
        %v882 = vld [vmem:[%s574] sm:$0x1]
        %v884 = vlaneseq
        %v885 = vshrl.u32 %v884, 7
        %v886 = vsub.s32 0, %v885
        %v887 = vrot.slane %v882, %v886
        %v889 = vadd.f32 %v880, %v887
        %v890 = vadd.f32 %v881, %v887
        %v891 = vpack.c.bf16 %v890, %v889
        %v892 = vld [vmem:[%s468] sm:$0xff]
        %v893 = vld [vmem:[%s468 + $0x8] sm:$0xff]
        %v894 = vld [vmem:[%s468 + $0x10] sm:$0xff]
        %v895 = vld [vmem:[%s468 + $0x18] sm:$0xff]
        %v896 = vld [vmem:[%s468 + $0x20] sm:$0xff]
        %v897 = vld [vmem:[%s468 + $0x28] sm:$0xff]
        %v898 = vld [vmem:[%s468 + $0x30] sm:$0xff]
        %v899 = vld [vmem:[%s468 + $0x38] sm:$0xff]
        %v900 = vld [vmem:[%s468 + $0x40] sm:$0xff]
        %v901 = vld [vmem:[%s468 + $0x48] sm:$0xff]
        %v902 = vld [vmem:[%s468 + $0x50] sm:$0xff]
        %v903 = vld [vmem:[%s468 + $0x58] sm:$0xff]
        %v904 = vld [vmem:[%s468 + $0x60] sm:$0xff]
        %v905 = vld [vmem:[%s468 + $0x68] sm:$0xff]
        %v906 = vld [vmem:[%s468 + $0x70] sm:$0xff]
        %v907 = vld [vmem:[%s468 + $0x78] sm:$0xff]
        %v908 = vld [vmem:[%s578] sm:$0x3]
        %v910 = vlaneseq
        %v911 = vshrl.u32 %v910, 7
        %v912 = vsub.s32 0, %v911
        %v913 = vrot.slane %v908, %v912
        %v914 = vlaneseq
        %v915 = vshrl.u32 %v914, 7
        %v916 = vsub.s32 1, %v915
        %v917 = vrot.slane %v908, %v916
        %v936 = vunpack.c.l.b16 %v892
        %v937 = vunpack.c.h.b16 %v892
        %v938 = vunpack.c.l.b16 %v893
        %v939 = vunpack.c.h.b16 %v893
        %v940 = vunpack.c.l.b16 %v894
        %v941 = vunpack.c.h.b16 %v894
        %v942 = vunpack.c.l.b16 %v895
        %v943 = vunpack.c.h.b16 %v895
        %v944 = vunpack.c.l.b16 %v896
        %v945 = vunpack.c.h.b16 %v896
        %v946 = vunpack.c.l.b16 %v897
        %v947 = vunpack.c.h.b16 %v897
        %v948 = vunpack.c.l.b16 %v898
        %v949 = vunpack.c.h.b16 %v898
        %v950 = vunpack.c.l.b16 %v899
        %v951 = vunpack.c.h.b16 %v899
        %v952 = vunpack.c.l.b16 %v900
        %v953 = vunpack.c.h.b16 %v900
        %v954 = vunpack.c.l.b16 %v901
        %v955 = vunpack.c.h.b16 %v901
        %v956 = vunpack.c.l.b16 %v902
        %v957 = vunpack.c.h.b16 %v902
        %v958 = vunpack.c.l.b16 %v903
        %v959 = vunpack.c.h.b16 %v903
        %v960 = vunpack.c.l.b16 %v904
        %v961 = vunpack.c.h.b16 %v904
        %v962 = vunpack.c.l.b16 %v905
        %v963 = vunpack.c.h.b16 %v905
        %v964 = vunpack.c.l.b16 %v906
        %v965 = vunpack.c.h.b16 %v906
        %v966 = vunpack.c.l.b16 %v907
        %v967 = vunpack.c.h.b16 %v907
        %v968 = vpack.c.b16 %v938, %v936
        %v969 = vpack.c.b16 %v939, %v937
        %v970 = vpack.c.b16 %v942, %v940
        %v971 = vpack.c.b16 %v943, %v941
        %v972 = vpack.c.b16 %v946, %v944
        %v973 = vpack.c.b16 %v947, %v945
        %v974 = vpack.c.b16 %v950, %v948
        %v975 = vpack.c.b16 %v951, %v949
        %v976 = vpack.c.b16 %v954, %v952
        %v977 = vpack.c.b16 %v955, %v953
        %v978 = vpack.c.b16 %v958, %v956
        %v979 = vpack.c.b16 %v959, %v957
        %v980 = vpack.c.b16 %v962, %v960
        %v981 = vpack.c.b16 %v963, %v961
        %v982 = vpack.c.b16 %v966, %v964
        %v983 = vpack.c.b16 %v967, %v965
        %1000 = vmatprep.subr.bf16.mxu0 %v969
        %1001 = vmatpush1.bf16.msra.mxu0 %v968
        %1002 = vmatprep.subr.bf16.mxu0 %v971
        %1003 = vmatpush1.bf16.msra.mxu0 %v970
        %1004 = vmatprep.subr.bf16.mxu0 %v973
        %1005 = vmatpush1.bf16.msra.mxu0 %v972
        %1006 = vmatprep.subr.bf16.mxu0 %v975
        %1007 = vmatpush1.bf16.msra.mxu0 %v974
        %1008 = vmatprep.subr.bf16.mxu0 %v977
        %1009 = vmatpush1.bf16.msra.mxu0 %v976
        %1010 = vmatprep.subr.bf16.mxu0 %v979
        %1011 = vmatpush1.bf16.msra.mxu0 %v978
        %1012 = vmatprep.subr.bf16.mxu0 %v981
        %1013 = vmatpush1.bf16.msra.mxu0 %v980
        %1014 = vmatprep.subr.bf16.mxu0 %v983
        %1015 = vmatpush1.bf16.msra.mxu0 %v982
        %1016 = vmatprep.subr.bf16.mxu0 0
        %1017 = vmatpush1.bf16.msra.mxu0 0
        %1018 = vmatprep.subr.bf16.mxu0 0
        %1019 = vmatpush1.bf16.msra.mxu0 0
        %1020 = vmatprep.subr.bf16.mxu0 0
        %1021 = vmatpush1.bf16.msra.mxu0 0
        %1022 = vmatprep.subr.bf16.mxu0 0
        %1023 = vmatpush1.bf16.msra.mxu0 0
        %1024 = vmatprep.subr.bf16.mxu0 0
        %1025 = vmatpush1.bf16.msra.mxu0 0
        %1026 = vmatprep.subr.bf16.mxu0 0
        %1027 = vmatpush1.bf16.msra.mxu0 0
        %1028 = vmatprep.subr.bf16.mxu0 0
        %1029 = vmatpush1.bf16.msra.mxu0 0
        %1030 = vmatprep.subr.bf16.mxu0 0
        %1031 = vmatpush1.bf16.msra.mxu0 0
        %1032 = vmatprep.mubr.bf16.mxu0 0
        %1033 = vmatmul.mubr.bf16.gmra.mrb[0].mxu0 %v891
        %v1034 = vpop.f32.mrb[0].mxu0
        %v1035 = vadd.f32 %v913, %v1034
        %v1036 = vpop.f32.mrb[0].mxu0
        %v1037 = vadd.f32 %v917, %v1036
        %v1038 = vpop.f32.mrb[0].mxu0
        %v1039 = vadd.f32 %v913, %v1038
        %v1040 = vpop.f32.mrb[0].mxu0
        %v1041 = vadd.f32 %v917, %v1040
        %1042 = vdwg.mxu0
        %v1043 = vadd.f32 %v598, %v1035
        %v1044 = vadd.f32 %v599, %v1039
        %1045 = vst [vmem:[#allocation2] sm:$0xff] %v1043
        %1046 = vst [vmem:[#allocation2 + $0x8] sm:$0x3f] %v1044
        %v1047 = vld [vmem:[%s583] sm:$0xff]
        %v1048 = vld [vmem:[%s583 + $0x8] sm:$0x3f]
        %v1049 = vadd.f32 %v1047, %v1037
        %v1050 = vadd.f32 %v1048, %v1041
        %1051 = vst [vmem:[%s583] sm:$0xff] %v1049
        %1052 = vst [vmem:[%s583 + $0x8] sm:$0x3f] %v1050
        %p1053 = scmp.lt.s32.totalorder %s36, 1
        %s1054 = scalar_select %p1053, %s36, 1
        %s1055 = smul.addr %s1054, 2
        %s1056 = smul.addr %s1055, 8
        %s1057 = scalar_lea.vmem %s12, %s1056
        // Predicated region
        $region73: #{tasnet_forward.4} parent=63 // pred_check
          %p1058 = pneg %p348
        $region74: #{tasnet_forward.4} parent=63 // pred_check_branch
          %1060 = sbr.rel (%p1058) target = $region76
        $region75: #{tasnet_forward.4} parent=63 // pred_region
          _
        $region76: #{tasnet_forward.4} parent=63 // pred_fallthru
          _
      $region64: #{tasnet_forward.4} parent=5 // pred_fallthru
        _
      %p1061 = scmp.le.s32.totalorder 2, %s27
      // Predicated region
      $region77: #{tasnet_forward.4} parent=5 // pred_check
        %p1062 = pneg %p1061
      $region78: #{tasnet_forward.4} parent=5 // pred_check_branch
        %1064 = sbr.rel (%p1062) target = $region80
      $region79: #{tasnet_forward.4} parent=5 // pred_region
        %s1065 = ssub.s32 %s27, 2
        // Predicated region
        $region81: #{tasnet_forward.4} parent=79 // pred_check
          %p1066 = pneg %p354
        $region82: #{tasnet_forward.4} parent=79 // pred_check_branch
          %1068 = sbr.rel (%p1066) target = $region84
        $region83: #{tasnet_forward.4} parent=79 // pred_region
          %p1069 = scmp.lt.s32.totalorder %s38, 1
          %s1070 = scalar_select %p1069, %s38, 1
          %s1071 = smul.addr %s1070, 2
          %s1072 = smul.addr %s1071, 8
          %s1073 = scalar_lea.vmem %s12, %s1072
        $region84: #{tasnet_forward.4} parent=79 // pred_fallthru
          _
      $region80: #{tasnet_forward.4} parent=5 // pred_fallthru
        _
    $region6: #{tasnet_forward.4} parent=1 // loop_footer
      %s31 = sadd.s32 1, %s27
    $region7: #{tasnet_forward.4} parent=1 // loop_footer_branch
      %26 = sbr.rel target = $region3
    $region8: #{tasnet_forward.4} parent=1 // loop_exit
      _
    %1074 = vsyncpa [#allocation7], 1
    %s1075 = scalar_lea.sflag [#allocation7], 1
    %1076 = vsyncpa %s1075, 1

</llo_original>
